<compile_context>
chip_gen: v7x
topology: tpu7x:2x2x1
jax: 0.10.0
libtpu: 0.0.40
codegen_flags: <defaults>
</compile_context>

<pallas_src>
import functools

import jax
import jax.numpy as jnp
from jax.experimental import pallas as pl
from jax.experimental.pallas import tpu as pltpu

BN_EPS = 1e-5  # model_config.HEAD.BATCHNORM_EPS default


def simclr_head_kernel(x_ref, w1_ref, gamma_ref, beta_ref, w2_ref, o_ref, *, eps):
    j = pl.program_id(1)                              # D1 tile within this core's shard
    k = pl.program_id(0) * pl.num_programs(1) + j     # global D1 tile index

    @pl.when(j == 0)
    def _():
        # Output block is resident across the reduction axis -> use it directly
        # as the f32 accumulator (no duplicated VMEM scratch, no final copy).
        o_ref[...] = jnp.zeros_like(o_ref)

    # ---- Linear(D0 -> D1) feature tile: bf16 MXU operands, f32 accumulation.
    # b1 is intentionally omitted: a bias immediately before training-mode
    # BatchNorm is cancelled exactly by the per-feature mean subtraction.
    h = jnp.dot(x_ref[...], w1_ref[...], preferred_element_type=jnp.float32)  # [B, tk]

    # ---- BatchNorm1d (training mode, biased variance), all-f32 statistics.
    # One reduction pass: sum and sum-of-squares; var = E[h^2] - mean^2.
    inv_b = 1.0 / h.shape[0]
    mean = jnp.sum(h, axis=0, keepdims=True) * inv_b                # [1, tk]
    mean_sq = jnp.sum(h * h, axis=0, keepdims=True) * inv_b         # [1, tk]
    var = jnp.maximum(mean_sq - mean * mean, 0.0)
    # TODO(synk): if |mean| >> std ever causes cancellation issues here, switch
    # to a shifted / two-pass variance per tile.

    # gamma/beta are fully resident; slice this tile's row (cheap sublane ds).
    gamma = gamma_ref[pl.ds(k, 1), :]                               # [1, tk]
    beta = beta_ref[pl.ds(k, 1), :]
    scale = gamma * jax.lax.rsqrt(var + eps)
    shift = beta - mean * scale
    h = jnp.maximum(h * scale + shift, 0.0)                         # folded BN + ReLU

    # ---- Linear(D1 -> D2) partial product, accumulated into the resident
    # f32 output block.  b2 is added outside, after the cross-core sum.
    o_ref[0] += jnp.dot(h.astype(jnp.bfloat16), w2_ref[...],
                        preferred_element_type=jnp.float32)


def _vmem_capacity_bytes():
    try:
        return int(pltpu.get_tpu_info().vmem_capacity_bytes)
    except Exception:
        return 64 << 20  # conservative (v7x per-core)


def _pick_d1_tile(d1, d1_tile):
    """Largest multiple of 128 that divides D1 and is <= d1_tile."""
    if d1 % 128 != 0:
        # TODO(synk): pad D1 to a lane multiple instead of using one full-D1 block.
        return d1
    t = min(d1_tile, d1)
    t -= t % 128
    while t >= 128:
        if d1 % t == 0:
            return t
        t -= 128
    return d1


def _spec(shape, index_map, mode):
    if mode is None:
        return pl.BlockSpec(shape, index_map)
    return pl.BlockSpec(shape, index_map, pipeline_mode=mode)


def simclr_head(x, w1, gamma, beta, w2, b2, *, eps=BN_EPS, d1_tile=None):
    """x: [B, D0]; w1: [D0, D1]; gamma/beta: [1, D1] or [D1]; w2: [D1, D2]; b2: [1, D2].

    BN needs the full batch per feature, so the batch stays resident and the grid
    iterates over D1 feature tiles (a reduction into the resident output block),
    sharded 2-way across TensorCores via the leading "parallel" axis.
    """
    B, D0 = x.shape
    D1 = w1.shape[1]
    D2 = w2.shape[1]

    vmem_cap = _vmem_capacity_bytes()
    if d1_tile is None:
        # v5e/v6e have 128 MiB VMEM -> bigger tiles (fewer per-step epilogues);
        # v7x has 64 MiB per core -> moderate tiles.
        d1_tile = 1024 if vmem_cap >= (100 << 20) else 512

    tk = _pick_d1_tile(D1, d1_tile)
    n_k = D1 // tk
    split = 2 if (n_k % 2 == 0 and n_k >= 2) else 1   # 2-way megacore shard of the D1 axis
    n_inner = n_k // split

    # bf16 strictly as MXU operands (accumulation / BN stats stay f32 in-kernel).
    # Casts are no-ops if the producer already emits bf16 (preferred in production,
    # so no extra un-hidden HBM pass is spent on a standalone astype).
    x_in = x if x.dtype == jnp.bfloat16 else x.astype(jnp.bfloat16)
    w1_in = w1 if w1.dtype == jnp.bfloat16 else w1.astype(jnp.bfloat16)
    w2_in = w2 if w2.dtype == jnp.bfloat16 else w2.astype(jnp.bfloat16)
    gamma_t = jnp.asarray(gamma, jnp.float32).reshape(n_k, tk)   # resident, row per tile
    beta_t = jnp.asarray(beta, jnp.float32).reshape(n_k, tk)
    b2_f = jnp.asarray(b2, jnp.float32).reshape(1, D2)

    kernel = functools.partial(simclr_head_kernel, eps=eps)

    def build(resident_mode):
        rb = 1 if resident_mode is not None else 2
        # Real per-core footprint: resident blocks (x, gamma, beta, out) x rb,
        # streamed w1/w2 tiles double-buffered, plus Mosaic headroom.
        footprint = (rb * B * D0 * 2          # x (bf16), resident
                     + 2 * D0 * tk * 2        # w1 tile (bf16), double-buffered
                     + 2 * tk * D2 * 2        # w2 tile (bf16), double-buffered
                     + rb * 2 * D1 * 4        # gamma + beta (f32), resident
                     + rb * B * D2 * 4)       # output block (f32), resident
        vmem_bytes = int(min(max(footprint + (4 << 20), 8 << 20), (vmem_cap * 5) // 8))
        return pl.pallas_call(
            kernel,
            out_shape=jax.ShapeDtypeStruct((split, B, D2), jnp.float32),
            grid=(split, n_inner),
            in_specs=[
                _spec((B, D0), lambda p, j: (0, 0), resident_mode),            # x: resident
                pl.BlockSpec((D0, tk), lambda p, j: (0, p * n_inner + j)),     # w1: streamed
                _spec((n_k, tk), lambda p, j: (0, 0), resident_mode),          # gamma: resident
                _spec((n_k, tk), lambda p, j: (0, 0), resident_mode),          # beta: resident
                pl.BlockSpec((tk, D2), lambda p, j: (p * n_inner + j, 0)),     # w2: streamed
            ],
            # Per-core output slab: constant index within a core -> resident accumulator.
            out_specs=_spec((1, B, D2), lambda p, j: (p, 0, 0), resident_mode),
            compiler_params=pltpu.CompilerParams(
                dimension_semantics=("parallel", "arbitrary"),
                vmem_limit_bytes=vmem_bytes,
            ),
        )

    try:
        partials = build(pl.Buffered(1))(x_in, w1_in, gamma_t, beta_t, w2_in)
    except Exception:
        # Fallback for Pallas builds that do not accept single-buffered
        # constant-index blocks; only costs extra (double-buffered) VMEM.
        partials = build(None)(x_in, w1_in, gamma_t, beta_t, w2_in)

    # Tiny XLA epilogue: combine per-core partial sums and apply the output bias.
    return jnp.sum(partials, axis=0) + b2_f


def init_params(key, dims):
    """PyTorch-like init: Linear uniform +-1/sqrt(fan_in); BN gamma=1, beta=0."""
    D0, D1, D2 = dims
    k1, k2, k3, k4 = jax.random.split(key, 4)
    bound1 = 1.0 / jnp.sqrt(D0)
    bound2 = 1.0 / jnp.sqrt(D1)
    w1 = jax.random.uniform(k1, (D0, D1), jnp.float32, -bound1, bound1)
    b1 = jax.random.uniform(k2, (1, D1), jnp.float32, -bound1, bound1)
    gamma = jnp.ones((1, D1), jnp.float32)
    beta = jnp.zeros((1, D1), jnp.float32)
    w2 = jax.random.uniform(k3, (D1, D2), jnp.float32, -bound2, bound2)
    b2 = jax.random.uniform(k4, (1, D2), jnp.float32, -bound2, bound2)
    return w1, b1, gamma, beta, w2, b2


def reference(x, w1, b1, gamma, beta, w2, b2, eps=BN_EPS):
    # Full-precision reference INCLUDING b1 (the kernel drops it; the BN mean
    # subtraction cancels it exactly, so the comparison remains valid).
    h = x @ w1 + b1
    mean = h.mean(axis=0, keepdims=True)
    var = ((h - mean) ** 2).mean(axis=0, keepdims=True)
    h = (h - mean) / jnp.sqrt(var + eps) * gamma + beta
    h = jnp.maximum(h, 0.0)
    return h @ w2 + b2


# TODO(synk): only the default 3-dim head (one Linear+BN+ReLU then Linear) is fused;
# deeper `dims` lists would chain this fused block per hidden layer.
# TODO(synk): eval-mode BN (running stats) and use_bn=False are not implemented; they
# would require reinstating b1 and passing running mean/var instead of batch stats.

if __name__ == "__main__":
    # Small shapes consistent with the module (scaled-down dims=[2048, 2048, 128]).
    B = 32
    dims = (256, 512, 128)  # [D0, D1, D2]

    key = jax.random.PRNGKey(0)
    kx, kp = jax.random.split(key)
    x = jax.random.normal(kx, (B, dims[0]), jnp.float32)
    w1, b1, gamma, beta, w2, b2 = init_params(kp, dims)

    # d1_tile=128 -> 4 D1 tiles -> grid (2, 2): exercises both the 2-way "parallel"
    # core split (separate output slabs) and the in-core accumulation path.
    out = simclr_head(x, w1, gamma, beta, w2, b2, d1_tile=128)
    out = jax.block_until_ready(out)

    ref = reference(x, w1, b1, gamma, beta, w2, b2)
    assert out.shape == (B, dims[2])
    # bf16 MXU operands (f32 accumulation / f32 BN stats) vs. pure-f32 reference.
    assert jnp.allclose(out, ref, atol=5e-2, rtol=5e-2), "mismatch vs JAX reference"

    print("KERNEL_OK")
</pallas_src>

<mosaic_0001>
module attributes {stable_mosaic.version = 11 : i64} {
  func.func @simclr_head_kernel(%arg0: i32, %arg1: i32, %arg2: memref<32x256xbf16, #tpu.memory_space<vmem>>, %arg3: memref<256x128xbf16, #tpu.memory_space<vmem>>, %arg4: memref<4x128xf32, #tpu.memory_space<vmem>>, %arg5: memref<4x128xf32, #tpu.memory_space<vmem>>, %arg6: memref<128x128xbf16, #tpu.memory_space<vmem>>, %arg7: memref<1x32x128xf32, #tpu.memory_space<vmem>>) attributes {dimension_semantics = [#tpu.dimension_semantics<parallel>, #tpu.dimension_semantics<arbitrary>], iteration_bounds = array<i64: 2, 2>, scalar_prefetch = 0 : i64, scratch_operands = 0 : i64, tpu.core_type = #tpu.core_type<tc>, window_params = [{pipeline_mode = #tpu.pipeline_mode<synchronous>, transform_indices = @transform_0, window_bounds = array<i64: 32, 256>}, {transform_indices = @transform_1, window_bounds = array<i64: 256, 128>}, {pipeline_mode = #tpu.pipeline_mode<synchronous>, transform_indices = @transform_2, window_bounds = array<i64: 4, 128>}, {pipeline_mode = #tpu.pipeline_mode<synchronous>, transform_indices = @transform_3, window_bounds = array<i64: 4, 128>}, {transform_indices = @transform_4, window_bounds = array<i64: 128, 128>}, {pipeline_mode = #tpu.pipeline_mode<synchronous>, transform_indices = @transform_5, window_bounds = array<i64: 1, 32, 128>}]} {
    %c2_i32 = arith.constant 2 : i32
    %0 = arith.muli %arg0, %c2_i32 : i32
    %1 = arith.addi %0, %arg1 : i32
    %c0_i32 = arith.constant 0 : i32
    %2 = arith.cmpi eq, %arg1, %c0_i32 : i32
    %3 = arith.extui %2 : i1 to i32
    %c0_i32_0 = arith.constant 0 : i32
    %4 = arith.cmpi ne, %3, %c0_i32_0 : i32
    scf.if %4 {
      %cst_22 = arith.constant 0.000000e+00 : f32
      %46 = vector.broadcast %cst_22 : f32 to vector<1x32x128xf32>
      %c0_23 = arith.constant 0 : index
      %c0_24 = arith.constant 0 : index
      %c0_25 = arith.constant 0 : index
      %47 = vector.load %arg7[%c0_23, %c0_24, %c0_25] : memref<1x32x128xf32, #tpu.memory_space<vmem>>, vector<1x32x128xf32>
      tpu.vector_store %arg7[%c0_23, %c0_24, %c0_25], %46 {strides = array<i32>} : memref<1x32x128xf32, #tpu.memory_space<vmem>>, vector<1x32x128xf32>,
    } else {
    }
    %c0 = arith.constant 0 : index
    %c0_1 = arith.constant 0 : index
    %5 = vector.load %arg2[%c0, %c0_1] : memref<32x256xbf16, #tpu.memory_space<vmem>>, vector<32x256xbf16>
    %c0_2 = arith.constant 0 : index
    %c0_3 = arith.constant 0 : index
    %6 = vector.load %arg3[%c0_2, %c0_3] : memref<256x128xbf16, #tpu.memory_space<vmem>>, vector<256x128xbf16>
    %cst = arith.constant dense<0.000000e+00> : vector<32x128xf32>
    %7 = tpu.matmul %5, %6, %cst {dimension_numbers = #tpu.dot_dimension_numbers<[1], [0], [0], [1], [0, 0, 1, 1], [], []>} : vector<32x256xbf16>, vector<256x128xbf16>, vector<32x128xf32> -> vector<32x128xf32>
    %cst_4 = arith.constant dense<0.000000e+00> : vector<128xf32>
    %8 = vector.multi_reduction <add>, %7, %cst_4 [0] : vector<32x128xf32> to vector<128xf32>
    %9 = vector.shape_cast %8 : vector<128xf32> to vector<1x128xf32>
    %cst_5 = arith.constant 3.125000e-02 : f32
    %10 = vector.broadcast %cst_5 : f32 to vector<1x128xf32>
    %11 = arith.mulf %9, %10 : vector<1x128xf32>
    %12 = arith.mulf %7, %7 : vector<32x128xf32>
    %cst_6 = arith.constant dense<0.000000e+00> : vector<128xf32>
    %13 = vector.multi_reduction <add>, %12, %cst_6 [0] : vector<32x128xf32> to vector<128xf32>
    %14 = vector.shape_cast %13 : vector<128xf32> to vector<1x128xf32>
    %cst_7 = arith.constant 3.125000e-02 : f32
    %15 = vector.broadcast %cst_7 : f32 to vector<1x128xf32>
    %16 = arith.mulf %14, %15 : vector<1x128xf32>
    %17 = arith.mulf %11, %11 : vector<1x128xf32>
    %18 = arith.subf %16, %17 : vector<1x128xf32>
    %cst_8 = arith.constant 0.000000e+00 : f32
    %19 = vector.broadcast %cst_8 : f32 to vector<1x128xf32>
    %20 = arith.maximumf %18, %19 : vector<1x128xf32>
    %21 = arith.index_cast %1 : i32 to index
    %c0_9 = arith.constant 0 : index
    %22 = vector.load %arg4[%21, %c0_9] : memref<4x128xf32, #tpu.memory_space<vmem>>, vector<1x128xf32>
    %23 = arith.index_cast %1 : i32 to index
    %c0_10 = arith.constant 0 : index
    %24 = vector.load %arg5[%23, %c0_10] : memref<4x128xf32, #tpu.memory_space<vmem>>, vector<1x128xf32>
    %cst_11 = arith.constant 9.99999974E-6 : f32
    %25 = vector.broadcast %cst_11 : f32 to vector<1x128xf32>
    %26 = arith.addf %20, %25 : vector<1x128xf32>
    %27 = math.rsqrt %26 : vector<1x128xf32>
    %28 = arith.mulf %22, %27 : vector<1x128xf32>
    %29 = arith.mulf %11, %28 : vector<1x128xf32>
    %30 = arith.subf %24, %29 : vector<1x128xf32>
    %31 = vector.broadcast %28 : vector<1x128xf32> to vector<32x128xf32>
    %32 = arith.mulf %7, %31 : vector<32x128xf32>
    %33 = vector.broadcast %30 : vector<1x128xf32> to vector<32x128xf32>
    %34 = arith.addf %32, %33 : vector<32x128xf32>
    %cst_12 = arith.constant 0.000000e+00 : f32
    %35 = vector.broadcast %cst_12 : f32 to vector<32x128xf32>
    %36 = arith.maximumf %34, %35 : vector<32x128xf32>
    %c0_13 = arith.constant 0 : index
    %c0_14 = arith.constant 0 : index
    %c0_15 = arith.constant 0 : index
    %37 = vector.load %arg7[%c0_13, %c0_14, %c0_15] : memref<1x32x128xf32, #tpu.memory_space<vmem>>, vector<1x32x128xf32>
    %38 = vector.shape_cast %37 : vector<1x32x128xf32> to vector<32x128xf32>
    %39 = arith.truncf %36 : vector<32x128xf32> to vector<32x128xbf16>
    %c0_16 = arith.constant 0 : index
    %c0_17 = arith.constant 0 : index
    %40 = vector.load %arg6[%c0_16, %c0_17] : memref<128x128xbf16, #tpu.memory_space<vmem>>, vector<128x128xbf16>
    %cst_18 = arith.constant dense<0.000000e+00> : vector<32x128xf32>
    %41 = tpu.matmul %39, %40, %cst_18 {dimension_numbers = #tpu.dot_dimension_numbers<[1], [0], [0], [1], [0, 0, 1, 1], [], []>} : vector<32x128xbf16>, vector<128x128xbf16>, vector<32x128xf32> -> vector<32x128xf32>
    %42 = arith.addf %38, %41 : vector<32x128xf32>
    %c0_19 = arith.constant 0 : index
    %c0_20 = arith.constant 0 : index
    %c0_21 = arith.constant 0 : index
    %43 = vector.load %arg7[%c0_19, %c0_20, %c0_21] : memref<1x32x128xf32, #tpu.memory_space<vmem>>, vector<1x32x128xf32>
    %44 = vector.shape_cast %43 : vector<1x32x128xf32> to vector<32x128xf32>
    %45 = vector.shape_cast %42 : vector<32x128xf32> to vector<1x32x128xf32>
    tpu.vector_store %arg7[%c0_19, %c0_20, %c0_21], %45 {strides = array<i32>} : memref<1x32x128xf32, #tpu.memory_space<vmem>>, vector<1x32x128xf32>,
    return
  }
  func.func @transform_0(%arg0: i32, %arg1: i32) -> (i32, i32) {
    %c0_i32 = arith.constant 0 : i32
    %c0_i32_0 = arith.constant 0 : i32
    %c0_i32_1 = arith.constant 0 : i32
    return %c0_i32, %c0_i32_0 : i32, i32
  }
  func.func @transform_1(%arg0: i32, %arg1: i32) -> (i32, i32) {
    %c2_i32 = arith.constant 2 : i32
    %0 = arith.muli %arg0, %c2_i32 : i32
    %1 = arith.addi %0, %arg1 : i32
    %c0_i32 = arith.constant 0 : i32
    %c0_i32_0 = arith.constant 0 : i32
    return %c0_i32, %1 : i32, i32
  }
  func.func @transform_2(%arg0: i32, %arg1: i32) -> (i32, i32) {
    %c0_i32 = arith.constant 0 : i32
    %c0_i32_0 = arith.constant 0 : i32
    %c0_i32_1 = arith.constant 0 : i32
    return %c0_i32, %c0_i32_0 : i32, i32
  }
  func.func @transform_3(%arg0: i32, %arg1: i32) -> (i32, i32) {
    %c0_i32 = arith.constant 0 : i32
    %c0_i32_0 = arith.constant 0 : i32
    %c0_i32_1 = arith.constant 0 : i32
    return %c0_i32, %c0_i32_0 : i32, i32
  }
  func.func @transform_4(%arg0: i32, %arg1: i32) -> (i32, i32) {
    %c2_i32 = arith.constant 2 : i32
    %0 = arith.muli %arg0, %c2_i32 : i32
    %1 = arith.addi %0, %arg1 : i32
    %c0_i32 = arith.constant 0 : i32
    %c0_i32_0 = arith.constant 0 : i32
    return %1, %c0_i32 : i32, i32
  }
  func.func @transform_5(%arg0: i32, %arg1: i32) -> (i32, i32, i32) {
    %c0_i32 = arith.constant 0 : i32
    %c0_i32_0 = arith.constant 0 : i32
    %c0_i32_1 = arith.constant 0 : i32
    return %arg0, %c0_i32, %c0_i32_0 : i32, i32, i32
  }
}

module attributes {stable_mosaic.version = 11 : i64} {
  func.func @simclr_head_kernel(%arg0: i32, %arg1: i32, %arg2: memref<32x256xbf16, #tpu.memory_space<vmem>>, %arg3: memref<256x128xbf16, #tpu.memory_space<vmem>>, %arg4: memref<4x128xf32, #tpu.memory_space<vmem>>, %arg5: memref<4x128xf32, #tpu.memory_space<vmem>>, %arg6: memref<128x128xbf16, #tpu.memory_space<vmem>>, %arg7: memref<1x32x128xf32, #tpu.memory_space<vmem>>) attributes {dimension_semantics = [#tpu.dimension_semantics<parallel>, #tpu.dimension_semantics<arbitrary>], iteration_bounds = array<i64: 2, 2>, scalar_prefetch = 0 : i64, scratch_operands = 0 : i64, tpu.core_type = #tpu.core_type<tc>, window_params = [{pipeline_mode = #tpu.pipeline_mode<synchronous>, transform_indices = @transform_0, window_bounds = array<i64: 32, 256>}, {transform_indices = @transform_1, window_bounds = array<i64: 256, 128>}, {pipeline_mode = #tpu.pipeline_mode<synchronous>, transform_indices = @transform_2, window_bounds = array<i64: 4, 128>}, {pipeline_mode = #tpu.pipeline_mode<synchronous>, transform_indices = @transform_3, window_bounds = array<i64: 4, 128>}, {transform_indices = @transform_4, window_bounds = array<i64: 128, 128>}, {transform_indices = @transform_5, window_bounds = array<i64: 1, 32, 128>}]} {
    %c2_i32 = arith.constant 2 : i32
    %0 = arith.muli %arg0, %c2_i32 : i32
    %1 = arith.addi %0, %arg1 : i32
    %c0_i32 = arith.constant 0 : i32
    %2 = arith.cmpi eq, %arg1, %c0_i32 : i32
    %3 = arith.extui %2 : i1 to i32
    %c0_i32_0 = arith.constant 0 : i32
    %4 = arith.cmpi ne, %3, %c0_i32_0 : i32
    scf.if %4 {
      %cst_22 = arith.constant 0.000000e+00 : f32
      %46 = vector.broadcast %cst_22 : f32 to vector<1x32x128xf32>
      %c0_23 = arith.constant 0 : index
      %c0_24 = arith.constant 0 : index
      %c0_25 = arith.constant 0 : index
      %47 = vector.load %arg7[%c0_23, %c0_24, %c0_25] : memref<1x32x128xf32, #tpu.memory_space<vmem>>, vector<1x32x128xf32>
      tpu.vector_store %arg7[%c0_23, %c0_24, %c0_25], %46 {strides = array<i32>} : memref<1x32x128xf32, #tpu.memory_space<vmem>>, vector<1x32x128xf32>,
    } else {
    }
    %c0 = arith.constant 0 : index
    %c0_1 = arith.constant 0 : index
    %5 = vector.load %arg2[%c0, %c0_1] : memref<32x256xbf16, #tpu.memory_space<vmem>>, vector<32x256xbf16>
    %c0_2 = arith.constant 0 : index
    %c0_3 = arith.constant 0 : index
    %6 = vector.load %arg3[%c0_2, %c0_3] : memref<256x128xbf16, #tpu.memory_space<vmem>>, vector<256x128xbf16>
    %cst = arith.constant dense<0.000000e+00> : vector<32x128xf32>
    %7 = tpu.matmul %5, %6, %cst {dimension_numbers = #tpu.dot_dimension_numbers<[1], [0], [0], [1], [0, 0, 1, 1], [], []>} : vector<32x256xbf16>, vector<256x128xbf16>, vector<32x128xf32> -> vector<32x128xf32>
    %cst_4 = arith.constant dense<0.000000e+00> : vector<128xf32>
    %8 = vector.multi_reduction <add>, %7, %cst_4 [0] : vector<32x128xf32> to vector<128xf32>
    %9 = vector.shape_cast %8 : vector<128xf32> to vector<1x128xf32>
    %cst_5 = arith.constant 3.125000e-02 : f32
    %10 = vector.broadcast %cst_5 : f32 to vector<1x128xf32>
    %11 = arith.mulf %9, %10 : vector<1x128xf32>
    %12 = arith.mulf %7, %7 : vector<32x128xf32>
    %cst_6 = arith.constant dense<0.000000e+00> : vector<128xf32>
    %13 = vector.multi_reduction <add>, %12, %cst_6 [0] : vector<32x128xf32> to vector<128xf32>
    %14 = vector.shape_cast %13 : vector<128xf32> to vector<1x128xf32>
    %cst_7 = arith.constant 3.125000e-02 : f32
    %15 = vector.broadcast %cst_7 : f32 to vector<1x128xf32>
    %16 = arith.mulf %14, %15 : vector<1x128xf32>
    %17 = arith.mulf %11, %11 : vector<1x128xf32>
    %18 = arith.subf %16, %17 : vector<1x128xf32>
    %cst_8 = arith.constant 0.000000e+00 : f32
    %19 = vector.broadcast %cst_8 : f32 to vector<1x128xf32>
    %20 = arith.maximumf %18, %19 : vector<1x128xf32>
    %21 = arith.index_cast %1 : i32 to index
    %c0_9 = arith.constant 0 : index
    %22 = vector.load %arg4[%21, %c0_9] : memref<4x128xf32, #tpu.memory_space<vmem>>, vector<1x128xf32>
    %23 = arith.index_cast %1 : i32 to index
    %c0_10 = arith.constant 0 : index
    %24 = vector.load %arg5[%23, %c0_10] : memref<4x128xf32, #tpu.memory_space<vmem>>, vector<1x128xf32>
    %cst_11 = arith.constant 9.99999974E-6 : f32
    %25 = vector.broadcast %cst_11 : f32 to vector<1x128xf32>
    %26 = arith.addf %20, %25 : vector<1x128xf32>
    %27 = math.rsqrt %26 : vector<1x128xf32>
    %28 = arith.mulf %22, %27 : vector<1x128xf32>
    %29 = arith.mulf %11, %28 : vector<1x128xf32>
    %30 = arith.subf %24, %29 : vector<1x128xf32>
    %31 = vector.broadcast %28 : vector<1x128xf32> to vector<32x128xf32>
    %32 = arith.mulf %7, %31 : vector<32x128xf32>
    %33 = vector.broadcast %30 : vector<1x128xf32> to vector<32x128xf32>
    %34 = arith.addf %32, %33 : vector<32x128xf32>
    %cst_12 = arith.constant 0.000000e+00 : f32
    %35 = vector.broadcast %cst_12 : f32 to vector<32x128xf32>
    %36 = arith.maximumf %34, %35 : vector<32x128xf32>
    %c0_13 = arith.constant 0 : index
    %c0_14 = arith.constant 0 : index
    %c0_15 = arith.constant 0 : index
    %37 = vector.load %arg7[%c0_13, %c0_14, %c0_15] : memref<1x32x128xf32, #tpu.memory_space<vmem>>, vector<1x32x128xf32>
    %38 = vector.shape_cast %37 : vector<1x32x128xf32> to vector<32x128xf32>
    %39 = arith.truncf %36 : vector<32x128xf32> to vector<32x128xbf16>
    %c0_16 = arith.constant 0 : index
    %c0_17 = arith.constant 0 : index
    %40 = vector.load %arg6[%c0_16, %c0_17] : memref<128x128xbf16, #tpu.memory_space<vmem>>, vector<128x128xbf16>
    %cst_18 = arith.constant dense<0.000000e+00> : vector<32x128xf32>
    %41 = tpu.matmul %39, %40, %cst_18 {dimension_numbers = #tpu.dot_dimension_numbers<[1], [0], [0], [1], [0, 0, 1, 1], [], []>} : vector<32x128xbf16>, vector<128x128xbf16>, vector<32x128xf32> -> vector<32x128xf32>
    %42 = arith.addf %38, %41 : vector<32x128xf32>
    %c0_19 = arith.constant 0 : index
    %c0_20 = arith.constant 0 : index
    %c0_21 = arith.constant 0 : index
    %43 = vector.load %arg7[%c0_19, %c0_20, %c0_21] : memref<1x32x128xf32, #tpu.memory_space<vmem>>, vector<1x32x128xf32>
    %44 = vector.shape_cast %43 : vector<1x32x128xf32> to vector<32x128xf32>
    %45 = vector.shape_cast %42 : vector<32x128xf32> to vector<1x32x128xf32>
    tpu.vector_store %arg7[%c0_19, %c0_20, %c0_21], %45 {strides = array<i32>} : memref<1x32x128xf32, #tpu.memory_space<vmem>>, vector<1x32x128xf32>,
    return
  }
  func.func @transform_0(%arg0: i32, %arg1: i32) -> (i32, i32) {
    %c0_i32 = arith.constant 0 : i32
    %c0_i32_0 = arith.constant 0 : i32
    %c0_i32_1 = arith.constant 0 : i32
    return %c0_i32, %c0_i32_0 : i32, i32
  }
  func.func @transform_1(%arg0: i32, %arg1: i32) -> (i32, i32) {
    %c2_i32 = arith.constant 2 : i32
    %0 = arith.muli %arg0, %c2_i32 : i32
    %1 = arith.addi %0, %arg1 : i32
    %c0_i32 = arith.constant 0 : i32
    %c0_i32_0 = arith.constant 0 : i32
    return %c0_i32, %1 : i32, i32
  }
  func.func @transform_2(%arg0: i32, %arg1: i32) -> (i32, i32) {
    %c0_i32 = arith.constant 0 : i32
    %c0_i32_0 = arith.constant 0 : i32
    %c0_i32_1 = arith.constant 0 : i32
    return %c0_i32, %c0_i32_0 : i32, i32
  }
  func.func @transform_3(%arg0: i32, %arg1: i32) -> (i32, i32) {
    %c0_i32 = arith.constant 0 : i32
    %c0_i32_0 = arith.constant 0 : i32
    %c0_i32_1 = arith.constant 0 : i32
    return %c0_i32, %c0_i32_0 : i32, i32
  }
  func.func @transform_4(%arg0: i32, %arg1: i32) -> (i32, i32) {
    %c2_i32 = arith.constant 2 : i32
    %0 = arith.muli %arg0, %c2_i32 : i32
    %1 = arith.addi %0, %arg1 : i32
    %c0_i32 = arith.constant 0 : i32
    %c0_i32_0 = arith.constant 0 : i32
    return %1, %c0_i32 : i32, i32
  }
  func.func @transform_5(%arg0: i32, %arg1: i32) -> (i32, i32, i32) {
    %c0_i32 = arith.constant 0 : i32
    %c0_i32_0 = arith.constant 0 : i32
    %c0_i32_1 = arith.constant 0 : i32
    return %arg0, %c0_i32, %c0_i32_0 : i32, i32, i32
  }
}

</mosaic_0001>

<llo_original>
// kernel: tpu_custom_call.1
$region0: #{tpu_custom_call.1}
  #allocation0 [shape = 'u32[]', space=smem, size = 0x4, offset = 0x4, fixed_abs, tag = 'smem constant byte address 0x4 - core index']
  #allocation1 [shape = 'u32[144,128]{1,0:T(1,128)}', space=vmem, size = 0x12000, scoped, tag = 'internal scratch']
  %s0 = inlined_call_operand.hbm [shape: bf16[32,256], index: 0, kind: input, shape index: {}]
  %s1 = inlined_call_operand.hbm [shape: bf16[256,512], index: 1, kind: input, shape index: {}]
  %s2 = inlined_call_operand.vmem [shape: f32[4,128], index: 2, kind: input, shape index: {}]
  %s3 = inlined_call_operand.vmem [shape: f32[4,128], index: 3, kind: input, shape index: {}]
  %s4 = inlined_call_operand.hbm [shape: bf16[512,128], index: 4, kind: input, shape index: {}]
  %s5 = inlined_call_operand.hbm [shape: f32[2,32,128], index: 5, kind: output, shape index: {}]
  %s6 = sld [smem:[#allocation0]]
  $region69: #{tpu_custom_call.1} parent=0
    _
  %s8 = ssub.s32 1, %s6
  %s9 = scalar_select 0, %s8, %s6
  $region1: #{tpu_custom_call.1} parent=0
    #allocation2 [shape = 'u8[16384]{0}', space=vmem, size = 0x4000, scoped, tag = 'input window, operand 0, single buffered']
    #allocation3 [shape = 's32[2]{0}', space=sflag, size = 0x8, scoped, tag = 'scoped memory for tpu_custom_call.1']
    #allocation4 [shape = 's32[2]{0}', space=sflag, size = 0x8, scoped, tag = 'scoped memory for tpu_custom_call.1']
    #allocation5 [shape = 'u8[131072]{0}', space=vmem, size = 0x20000, scoped, tag = 'input window, operand 1']
    #allocation6 [shape = 's32[2]{0}', space=sflag, size = 0x8, scoped, tag = 'scoped memory for tpu_custom_call.1']
    #allocation7 [shape = 'u8[65536]{0}', space=vmem, size = 0x10000, scoped, tag = 'input window, operand 4']
    #allocation8 [shape = 'u8[16384]{0}', space=vmem, size = 0x4000, scoped, tag = 'output window, operand 0, single buffered']
    %10 = vsyncpa [#allocation3], 0
    %11 = vsyncpa [#allocation6], 0
    %s12 = scalar_lea.sflag [#allocation6], 1
    %13 = vsyncpa %s12, 0
    %14 = vsyncpa [#allocation4], 0
    loop: start=0, step=1, limit=6
    $region2: #{tpu_custom_call.1} parent=1 // loop_pre_header
      _
    $region3: #{tpu_custom_call.1} parent=1 // loop_header
      %s16 = sphi 0, %s20
      %p17 = scmp.ge.s32.totalorder %s16, 6
      %s23 = sphi 0, %s35
      %s24 = sphi 0, %s31
      %s25 = sphi 0, %s23
      %s26 = sphi 0, %s24
      %s27 = sphi 0, %s25
      %s28 = sphi 0, %s26
      %s36 = sphi 0, %s36
      %s38 = sphi 0, %s36
      %s39 = sphi 0, %s38
      %s53 = sphi 0, %s39
      %s63 = sphi 0, %s65
      %s66 = sphi 0, %s63
      %s67 = sphi 0, %s66
      %s83 = sphi 0, %s67
      %s87 = sphi 0, %s87
      %s89 = sphi 0, %s87
      %s90 = sphi 0, %s89
      %s104 = sphi 0, %s90
      %s108 = sphi 0, %s108
      %s110 = sphi 0, %s108
      %s111 = sphi 0, %s110
      %s125 = sphi 0, %s111
      %s135 = sphi 0, %s137
      %s138 = sphi 0, %s135
      %s139 = sphi 0, %s138
      %s155 = sphi 0, %s139
      %s161 = sphi 0, %s163
      %s164 = sphi 0, %s161
      %s165 = sphi 0, %s164
      %s181 = sphi 0, %s165
    $region4: #{tpu_custom_call.1} parent=1 // loop_header_branch
      %19 = sbr.rel (%p17) target = $region8
    $region5: #{tpu_custom_call.1} parent=1 // loop_body
      %s21 = ssub.s32 %s16, 1
      %s22 = ssub.s32 %s16, 2
      %s29 = sadd.s32 1, %s24
      %p30 = scmp.ge.s32.totalorder %s29, 2
      %s31 = scalar_select %p30, 0, %s29
      %s32 = sadd.s32 1, %s23
      %s33 = scalar_select %p30, %s32, %s23
      %p34 = scmp.ge.s32.totalorder %s33, 2
      %s35 = scalar_select %p34, 0, %s33
      %s37 = sadd.s32 %s36, 1
      %p40 = scmp.eq.s32.totalorder %s16, 3
      %p41 = scmp.ne.s32.totalorder %s36, %s38
      %p42 = scmp.eq.s32.totalorder %s16, 0
      %p43 = por %p41, %p42
      %p44 = scmp.ne.s32.totalorder %s36, %s38
      %p45 = scmp.eq.s32.totalorder %s21, 3
      %p46 = por %p44, %p45
      %p47 = scmp.ne.s32.totalorder %s38, %s39
      %p48 = scmp.eq.s32.totalorder %s21, 0
      %p49 = por %p47, %p48
      %p50 = scmp.ne.s32.totalorder %s38, %s39
      %p51 = scmp.eq.s32.totalorder %s22, 3
      %p52 = por %p50, %p51
      %p54 = scmp.ne.s32.totalorder %s39, %s53
      %p55 = scmp.eq.s32.totalorder %s22, 0
      %p56 = por %p54, %p55
      %s57 = smul.u32 %s23, 2
      %s58 = sadd.s32 %s57, %s24
      %s59 = smul.u32 %s35, 2
      %s60 = sadd.s32 %s59, %s31
      %s61 = ssub.s32 %s58, %s60
      %p62 = scmp.eq.s32.totalorder %s61, 0
      %s64 = sadd.s32 %s63, 1
      %s65 = scalar_select %p62, %s63, %s64
      %p68 = pneg %p62
      %p69 = scmp.eq.s32.totalorder %s16, 3
      %p70 = por %p68, %p69
      %p71 = scmp.ne.s32.totalorder %s63, %s66
      %p72 = scmp.eq.s32.totalorder %s16, 0
      %p73 = por %p71, %p72
      %p74 = scmp.ne.s32.totalorder %s63, %s66
      %p75 = scmp.eq.s32.totalorder %s21, 3
      %p76 = por %p74, %p75
      %p77 = scmp.ne.s32.totalorder %s66, %s67
      %p78 = scmp.eq.s32.totalorder %s21, 0
      %p79 = por %p77, %p78
      %p80 = scmp.ne.s32.totalorder %s66, %s67
      %p81 = scmp.eq.s32.totalorder %s22, 3
      %p82 = por %p80, %p81
      %p84 = scmp.ne.s32.totalorder %s67, %s83
      %p85 = scmp.eq.s32.totalorder %s22, 0
      %p86 = por %p84, %p85
      %s88 = sadd.s32 %s87, 1
      %p91 = scmp.eq.s32.totalorder %s16, 3
      %p92 = scmp.ne.s32.totalorder %s87, %s89
      %p93 = scmp.eq.s32.totalorder %s16, 0
      %p94 = por %p92, %p93
      %p95 = scmp.ne.s32.totalorder %s87, %s89
      %p96 = scmp.eq.s32.totalorder %s21, 3
      %p97 = por %p95, %p96
      %p98 = scmp.ne.s32.totalorder %s89, %s90
      %p99 = scmp.eq.s32.totalorder %s21, 0
      %p100 = por %p98, %p99
      %p101 = scmp.ne.s32.totalorder %s89, %s90
      %p102 = scmp.eq.s32.totalorder %s22, 3
      %p103 = por %p101, %p102
      %p105 = scmp.ne.s32.totalorder %s90, %s104
      %p106 = scmp.eq.s32.totalorder %s22, 0
      %p107 = por %p105, %p106
      %s109 = sadd.s32 %s108, 1
      %p112 = scmp.eq.s32.totalorder %s16, 3
      %p113 = scmp.ne.s32.totalorder %s108, %s110
      %p114 = scmp.eq.s32.totalorder %s16, 0
      %p115 = por %p113, %p114
      %p116 = scmp.ne.s32.totalorder %s108, %s110
      %p117 = scmp.eq.s32.totalorder %s21, 3
      %p118 = por %p116, %p117
      %p119 = scmp.ne.s32.totalorder %s110, %s111
      %p120 = scmp.eq.s32.totalorder %s21, 0
      %p121 = por %p119, %p120
      %p122 = scmp.ne.s32.totalorder %s110, %s111
      %p123 = scmp.eq.s32.totalorder %s22, 3
      %p124 = por %p122, %p123
      %p126 = scmp.ne.s32.totalorder %s111, %s125
      %p127 = scmp.eq.s32.totalorder %s22, 0
      %p128 = por %p126, %p127
      %s129 = smul.u32 %s23, 2
      %s130 = sadd.s32 %s129, %s24
      %s131 = smul.u32 %s35, 2
      %s132 = sadd.s32 %s131, %s31
      %s133 = ssub.s32 %s130, %s132
      %p134 = scmp.eq.s32.totalorder %s133, 0
      %s136 = sadd.s32 %s135, 1
      %s137 = scalar_select %p134, %s135, %s136
      %p140 = pneg %p134
      %p141 = scmp.eq.s32.totalorder %s16, 3
      %p142 = por %p140, %p141
      %p143 = scmp.ne.s32.totalorder %s135, %s138
      %p144 = scmp.eq.s32.totalorder %s16, 0
      %p145 = por %p143, %p144
      %p146 = scmp.ne.s32.totalorder %s135, %s138
      %p147 = scmp.eq.s32.totalorder %s21, 3
      %p148 = por %p146, %p147
      %p149 = scmp.ne.s32.totalorder %s138, %s139
      %p150 = scmp.eq.s32.totalorder %s21, 0
      %p151 = por %p149, %p150
      %p152 = scmp.ne.s32.totalorder %s138, %s139
      %p153 = scmp.eq.s32.totalorder %s22, 3
      %p154 = por %p152, %p153
      %p156 = scmp.ne.s32.totalorder %s139, %s155
      %p157 = scmp.eq.s32.totalorder %s22, 0
      %p158 = por %p156, %p157
      %s159 = ssub.s32 %s23, %s35
      %p160 = scmp.eq.s32.totalorder %s159, 0
      %s162 = sadd.s32 %s161, 1
      %s163 = scalar_select %p160, %s161, %s162
      %p166 = pneg %p160
      %p167 = scmp.eq.s32.totalorder %s16, 3
      %p168 = por %p166, %p167
      %p169 = scmp.ne.s32.totalorder %s161, %s164
      %p170 = scmp.eq.s32.totalorder %s16, 0
      %p171 = por %p169, %p170
      %p172 = scmp.ne.s32.totalorder %s161, %s164
      %p173 = scmp.eq.s32.totalorder %s21, 3
      %p174 = por %p172, %p173
      %p175 = scmp.ne.s32.totalorder %s164, %s165
      %p176 = scmp.eq.s32.totalorder %s21, 0
      %p177 = por %p175, %p176
      %p178 = scmp.ne.s32.totalorder %s164, %s165
      %p179 = scmp.eq.s32.totalorder %s22, 3
      %p180 = por %p178, %p179
      %p182 = scmp.ne.s32.totalorder %s165, %s181
      %p183 = scmp.eq.s32.totalorder %s22, 0
      %p184 = por %p182, %p183
      %p185 = scmp.le.s32.totalorder 1, %s16
      %p186 = scmp.lt.s32.totalorder %s16, 5
      %p187 = pnand %p185, %p186
      %p188 = pneg %p187
      // Predicated region
      $region9: #{tpu_custom_call.1} parent=5 // pred_check
        _
      $region10: #{tpu_custom_call.1} parent=5 // pred_check_branch
        %190 = sbr.rel (%p187) target = $region12
      $region11: #{tpu_custom_call.1} parent=5 // pred_region
        %s191 = ssub.s32 %s16, 1
        // Predicated region
        $region13: #{tpu_custom_call.1} parent=11 // pred_check
          %p192 = pneg %p49
        $region14: #{tpu_custom_call.1} parent=11 // pred_check_branch
          %194 = sbr.rel (%p192) target = $region16
        $region15: #{tpu_custom_call.1} parent=11 // pred_region
          %s196 = ssub.s32 512, 512
          %197 = vsyncadd [#allocation3], %s196
          %s198 = sshll.u32 [#allocation2], 4
          %s199 = int_to_ptr.vmem [resolvable:$true] %s198
          %204 = dma.hbm_to_vmem [thread:$0]  %s0, 512, %s199, [#allocation3], 128, 128, 8
        $region16: #{tpu_custom_call.1} parent=11 // pred_fallthru
          _
        // Predicated region
        $region17: #{tpu_custom_call.1} parent=11 // pred_check
          %p205 = pneg %p100
        $region18: #{tpu_custom_call.1} parent=11 // pred_check_branch
          %207 = sbr.rel (%p205) target = $region20
        $region19: #{tpu_custom_call.1} parent=11 // pred_region
          _
        $region20: #{tpu_custom_call.1} parent=11 // pred_fallthru
          _
        // Predicated region
        $region21: #{tpu_custom_call.1} parent=11 // pred_check
          %p208 = pneg %p121
        $region22: #{tpu_custom_call.1} parent=11 // pred_check_branch
          %210 = sbr.rel (%p208) target = $region24
        $region23: #{tpu_custom_call.1} parent=11 // pred_region
          _
        $region24: #{tpu_custom_call.1} parent=11 // pred_fallthru
          _
      $region12: #{tpu_custom_call.1} parent=5 // pred_fallthru
        _
      %p211 = scmp.lt.s32.totalorder %s16, 4
      // Predicated region
      $region25: #{tpu_custom_call.1} parent=5 // pred_check
        %p212 = pneg %p211
      $region26: #{tpu_custom_call.1} parent=5 // pred_check_branch
        %214 = sbr.rel (%p212) target = $region28
      $region27: #{tpu_custom_call.1} parent=5 // pred_region
        // Predicated region
        $region29: #{tpu_custom_call.1} parent=27 // pred_check
          %p215 = pneg %p73
        $region30: #{tpu_custom_call.1} parent=27 // pred_check_branch
          %217 = sbr.rel (%p215) target = $region32
        $region31: #{tpu_custom_call.1} parent=27 // pred_region
          %s218 = sand.u32 %s16, 1
          %s219 = scalar_lea.sflag [#allocation6], %s218
          %s220 = sand.u32 %s63, 1
          %s221 = smul.addr %s220, 128
          %s222 = scalar_lea.vmem [#allocation5], %s221
          %s223 = smul.u32 %s23, 2
          %s224 = sadd.s32 %s223, %s24
          %s226 = ssub.s32 2048, 2048
          %227 = vsyncadd %s219, %s226
          %s228 = smul.addr %s224, 64
          %s229 = scalar_lea.hbm %s1, %s228
          %s230 = sshll.u32 %s222, 4
          %s231 = int_to_ptr.vmem [resolvable:$true] %s230
          %236 = dma.hbm_to_vmem [thread:$0]  %s229, 2048, %s231, %s219, 256, 64, 4
        $region32: #{tpu_custom_call.1} parent=27 // pred_fallthru
          _
        // Predicated region
        $region33: #{tpu_custom_call.1} parent=27 // pred_check
          %p237 = pneg %p145
        $region34: #{tpu_custom_call.1} parent=27 // pred_check_branch
          %239 = sbr.rel (%p237) target = $region36
        $region35: #{tpu_custom_call.1} parent=27 // pred_region
          %s240 = sand.u32 %s16, 1
          %s241 = scalar_lea.sflag [#allocation6], %s240
          %s242 = sand.u32 %s135, 1
          %s243 = smul.addr %s242, 64
          %s244 = scalar_lea.vmem [#allocation7], %s243
          %s245 = smul.u32 %s23, 2
          %s246 = sadd.s32 %s245, %s24
          %s247 = smul.u32 16, %s246
          %s249 = ssub.s32 1024, 1024
          %250 = vsyncadd %s241, %s249
          %s251 = smul.addr %s247, 64
          %s252 = scalar_lea.hbm %s4, %s251
          %s253 = sshll.u32 %s244, 4
          %s254 = int_to_ptr.vmem [resolvable:$true] %s253
          %259 = dma.hbm_to_vmem [thread:$0]  %s252, 1024, %s254, %s241, 64, 64, 4
        $region36: #{tpu_custom_call.1} parent=27 // pred_fallthru
          _
      $region28: #{tpu_custom_call.1} parent=5 // pred_fallthru
        _
      %p260 = scmp.le.s32.totalorder 1, %s16
      %p261 = scmp.lt.s32.totalorder %s16, 5
      %p262 = pnand %p260, %p261
      %p263 = pneg %p262
      // Predicated region
      $region37: #{tpu_custom_call.1} parent=5 // pred_check
        _
      $region38: #{tpu_custom_call.1} parent=5 // pred_check_branch
        %265 = sbr.rel (%p262) target = $region40
      $region39: #{tpu_custom_call.1} parent=5 // pred_region
        %s266 = ssub.s32 %s16, 1
        // Predicated region
        $region41: #{tpu_custom_call.1} parent=39 // pred_check
          %p267 = pneg %p49
        $region42: #{tpu_custom_call.1} parent=39 // pred_check_branch
          %269 = sbr.rel (%p267) target = $region44
        $region43: #{tpu_custom_call.1} parent=39 // pred_region
          %270 = dma.done [#allocation3], 512
        $region44: #{tpu_custom_call.1} parent=39 // pred_fallthru
          _
        %s271 = sand.u32 %s21, 1
        %s272 = scalar_lea.sflag [#allocation6], %s271
        %s273 = sand.u32 %s66, 1
        %s274 = smul.addr %s273, 128
        %s275 = scalar_lea.vmem [#allocation5], %s274
        // Predicated region
        $region45: #{tpu_custom_call.1} parent=39 // pred_check
          %p276 = pneg %p79
        $region46: #{tpu_custom_call.1} parent=39 // pred_check_branch
          %278 = sbr.rel (%p276) target = $region48
        $region47: #{tpu_custom_call.1} parent=39 // pred_region
          %279 = dma.done %s272, 2048
        $region48: #{tpu_custom_call.1} parent=39 // pred_fallthru
          _
        %s280 = sand.u32 %s21, 1
        %s281 = scalar_lea.sflag [#allocation6], %s280
        %s282 = sand.u32 %s138, 1
        %s283 = smul.addr %s282, 64
        %s284 = scalar_lea.vmem [#allocation7], %s283
        // Predicated region
        $region49: #{tpu_custom_call.1} parent=39 // pred_check
          %p285 = pneg %p151
        $region50: #{tpu_custom_call.1} parent=39 // pred_check_branch
          %287 = sbr.rel (%p285) target = $region52
        $region51: #{tpu_custom_call.1} parent=39 // pred_region
          %288 = dma.done %s281, 1024
        $region52: #{tpu_custom_call.1} parent=39 // pred_fallthru
          _
        %p289 = pneg %p49
        %p290 = pneg %p46
        %s291 = sand.u32 %s21, 1
        %s292 = scalar_lea.sflag [#allocation6], %s291
        %s293 = sand.u32 %s66, 1
        %s294 = smul.addr %s293, 128
        %s295 = scalar_lea.vmem [#allocation5], %s294
        %p296 = pneg %p79
        %p297 = pneg %p76
        %p298 = pneg %p100
        %p299 = pneg %p97
        %p300 = pneg %p121
        %p301 = pneg %p118
        %s302 = sand.u32 %s21, 1
        %s303 = scalar_lea.sflag [#allocation6], %s302
        %s304 = sand.u32 %s138, 1
        %s305 = smul.addr %s304, 64
        %s306 = scalar_lea.vmem [#allocation7], %s305
        %p307 = pneg %p151
        %p308 = pneg %p148
        %p309 = pneg %p177
        %p310 = pneg %p174
        %s311 = smul.u32 %s25, 2
        %s312 = sadd.s32 %s311, %s26
        %s313 = smul.u32 %s25, 2
        %s314 = sadd.s32 %s313, %s26
        %s315 = smul.u32 16, %s314
        %s317 = smul.u32 %s25, 2
        %s318 = sadd.s32 %s317, %s26
        %p319 = scmp.eq.s32.totalorder %s26, 0
        // Predicated region
        $region53: #{tpu_custom_call.1} parent=39 // pred_check
          %p320 = pneg %p319
        $region54: #{tpu_custom_call.1} parent=39 // pred_check_branch
          %322 = sbr.rel (%p320) target = $region56
        $region55: #{tpu_custom_call.1} parent=39 // pred_region
          %323 = vst [vmem:[#allocation8] sm:$0xff] 0.0
          %324 = vst [vmem:[#allocation8 + $0x8] sm:$0xff] 0.0
          %325 = vst [vmem:[#allocation8 + $0x10] sm:$0xff] 0.0
          %326 = vst [vmem:[#allocation8 + $0x18] sm:$0xff] 0.0
        $region56: #{tpu_custom_call.1} parent=39 // pred_fallthru
          _
        %v327 = vld [vmem:[#allocation2] sm:$0xff]
        %v328 = vld [vmem:[#allocation2 + $0x8] sm:$0xff]
        %v329 = vld [vmem:[#allocation2 + $0x10] sm:$0xff]
        %v330 = vld [vmem:[#allocation2 + $0x18] sm:$0xff]
        %v331 = vld [vmem:[%s275] sm:$0xf]
        %v332 = vld [vmem:[%s275 + $0x4] sm:$0xf]
        %v333 = vld [vmem:[%s275 + $0x8] sm:$0xf]
        %v334 = vld [vmem:[%s275 + $0xc] sm:$0xf]
        %v335 = vld [vmem:[%s275 + $0x10] sm:$0xf]
        %v336 = vld [vmem:[%s275 + $0x14] sm:$0xf]
        %v337 = vld [vmem:[%s275 + $0x18] sm:$0xf]
        %v338 = vld [vmem:[%s275 + $0x1c] sm:$0xf]
        %v339 = vld [vmem:[%s275 + $0x20] sm:$0xf]
        %v340 = vld [vmem:[%s275 + $0x24] sm:$0xf]
        %v341 = vld [vmem:[%s275 + $0x28] sm:$0xf]
        %v342 = vld [vmem:[%s275 + $0x2c] sm:$0xf]
        %v343 = vld [vmem:[%s275 + $0x30] sm:$0xf]
        %v344 = vld [vmem:[%s275 + $0x34] sm:$0xf]
        %v345 = vld [vmem:[%s275 + $0x38] sm:$0xf]
        %v346 = vld [vmem:[%s275 + $0x3c] sm:$0xf]
        %v347 = vld [vmem:[%s275 + $0x40] sm:$0xf]
        %v348 = vld [vmem:[%s275 + $0x44] sm:$0xf]
        %v349 = vld [vmem:[%s275 + $0x48] sm:$0xf]
        %v350 = vld [vmem:[%s275 + $0x4c] sm:$0xf]
        %v351 = vld [vmem:[%s275 + $0x50] sm:$0xf]
        %v352 = vld [vmem:[%s275 + $0x54] sm:$0xf]
        %v353 = vld [vmem:[%s275 + $0x58] sm:$0xf]
        %v354 = vld [vmem:[%s275 + $0x5c] sm:$0xf]
        %v355 = vld [vmem:[%s275 + $0x60] sm:$0xf]
        %v356 = vld [vmem:[%s275 + $0x64] sm:$0xf]
        %v357 = vld [vmem:[%s275 + $0x68] sm:$0xf]
        %v358 = vld [vmem:[%s275 + $0x6c] sm:$0xf]
        %v359 = vld [vmem:[%s275 + $0x70] sm:$0xf]
        %v360 = vld [vmem:[%s275 + $0x74] sm:$0xf]
        %v361 = vld [vmem:[%s275 + $0x78] sm:$0xf]
        %v362 = vld [vmem:[%s275 + $0x7c] sm:$0xf]
        %v367 = vunpack.c.l.b16 %v327
        %v368 = vunpack.c.h.b16 %v327
        %v369 = vunpack.c.l.b16 %v328
        %v370 = vunpack.c.h.b16 %v328
        %v371 = vunpack.c.l.b16 %v329
        %v372 = vunpack.c.h.b16 %v329
        %v373 = vunpack.c.l.b16 %v330
        %v374 = vunpack.c.h.b16 %v330
        %v375 = vpack.c.b16 %v369, %v367
        %v376 = vpack.c.b16 %v370, %v368
        %v377 = vpack.c.b16 %v373, %v371
        %v378 = vpack.c.b16 %v374, %v372
        %v415 = vunpack.c.l.b16 %v331
        %v416 = vunpack.c.l.b16 %v332
        %v417 = vunpack.c.l.b16 %v333
        %v418 = vunpack.c.l.b16 %v334
        %v419 = vunpack.c.l.b16 %v335
        %v420 = vunpack.c.l.b16 %v336
        %v421 = vunpack.c.l.b16 %v337
        %v422 = vunpack.c.l.b16 %v338
        %v423 = vunpack.c.l.b16 %v339
        %v424 = vunpack.c.l.b16 %v340
        %v425 = vunpack.c.l.b16 %v341
        %v426 = vunpack.c.l.b16 %v342
        %v427 = vunpack.c.l.b16 %v343
        %v428 = vunpack.c.l.b16 %v344
        %v429 = vunpack.c.l.b16 %v345
        %v430 = vunpack.c.l.b16 %v346
        %v431 = vunpack.c.l.b16 %v347
        %v432 = vunpack.c.l.b16 %v348
        %v433 = vunpack.c.l.b16 %v349
        %v434 = vunpack.c.l.b16 %v350
        %v435 = vunpack.c.l.b16 %v351
        %v436 = vunpack.c.l.b16 %v352
        %v437 = vunpack.c.l.b16 %v353
        %v438 = vunpack.c.l.b16 %v354
        %v439 = vunpack.c.l.b16 %v355
        %v440 = vunpack.c.l.b16 %v356
        %v441 = vunpack.c.l.b16 %v357
        %v442 = vunpack.c.l.b16 %v358
        %v443 = vunpack.c.l.b16 %v359
        %v444 = vunpack.c.l.b16 %v360
        %v445 = vunpack.c.l.b16 %v361
        %v446 = vunpack.c.l.b16 %v362
        %v447 = vpack.c.b16 %v416, %v415
        %v448 = vpack.c.b16 %v418, %v417
        %v449 = vpack.c.b16 %v420, %v419
        %v450 = vpack.c.b16 %v422, %v421
        %v451 = vpack.c.b16 %v424, %v423
        %v452 = vpack.c.b16 %v426, %v425
        %v453 = vpack.c.b16 %v428, %v427
        %v454 = vpack.c.b16 %v430, %v429
        %v455 = vpack.c.b16 %v432, %v431
        %v456 = vpack.c.b16 %v434, %v433
        %v457 = vpack.c.b16 %v436, %v435
        %v458 = vpack.c.b16 %v438, %v437
        %v459 = vpack.c.b16 %v440, %v439
        %v460 = vpack.c.b16 %v442, %v441
        %v461 = vpack.c.b16 %v444, %v443
        %v462 = vpack.c.b16 %v446, %v445
        %479 = vmatprep.subr.bf16.mxu0 0
        %480 = vmatpush1.bf16.msra.mxu0 %v447
        %481 = vmatprep.subr.bf16.mxu0 0
        %482 = vmatpush1.bf16.msra.mxu0 %v448
        %483 = vmatprep.subr.bf16.mxu0 0
        %484 = vmatpush1.bf16.msra.mxu0 %v449
        %485 = vmatprep.subr.bf16.mxu0 0
        %486 = vmatpush1.bf16.msra.mxu0 %v450
        %487 = vmatprep.subr.bf16.mxu0 0
        %488 = vmatpush1.bf16.msra.mxu0 %v451
        %489 = vmatprep.subr.bf16.mxu0 0
        %490 = vmatpush1.bf16.msra.mxu0 %v452
        %491 = vmatprep.subr.bf16.mxu0 0
        %492 = vmatpush1.bf16.msra.mxu0 %v453
        %493 = vmatprep.subr.bf16.mxu0 0
        %494 = vmatpush1.bf16.msra.mxu0 %v454
        %495 = vmatprep.subr.bf16.mxu0 0
        %496 = vmatpush1.bf16.msra.mxu0 %v455
        %497 = vmatprep.subr.bf16.mxu0 0
        %498 = vmatpush1.bf16.msra.mxu0 %v456
        %499 = vmatprep.subr.bf16.mxu0 0
        %500 = vmatpush1.bf16.msra.mxu0 %v457
        %501 = vmatprep.subr.bf16.mxu0 0
        %502 = vmatpush1.bf16.msra.mxu0 %v458
        %503 = vmatprep.subr.bf16.mxu0 0
        %504 = vmatpush1.bf16.msra.mxu0 %v459
        %505 = vmatprep.subr.bf16.mxu0 0
        %506 = vmatpush1.bf16.msra.mxu0 %v460
        %507 = vmatprep.subr.bf16.mxu0 0
        %508 = vmatpush1.bf16.msra.mxu0 %v461
        %509 = vmatprep.subr.bf16.mxu0 0
        %510 = vmatpush1.bf16.msra.mxu0 %v462
        %511 = vmatprep.mubr.bf16.mxu0 %v376
        %512 = vmatmul.mubr.bf16.gmra.mrb[0].mxu0 %v375
        %v513 = vpop.f32.mrb[0].mxu0
        %v514 = vadd.f32 0.0, %v513
        %v515 = vpop.f32.mrb[0].mxu0
        %v516 = vpop.f32.mrb[0].mxu0
        %v517 = vadd.f32 0.0, %v516
        %v518 = vpop.f32.mrb[0].mxu0
        %519 = vmatprep.mubr.bf16.mxu0 %v378
        %520 = vmatmul.mubr.bf16.gmra.mrb[0].mxu0 %v377
        %v521 = vpop.f32.mrb[0].mxu0
        %v522 = vadd.f32 0.0, %v521
        %v523 = vpop.f32.mrb[0].mxu0
        %v524 = vpop.f32.mrb[0].mxu0
        %v525 = vadd.f32 0.0, %v524
        %v526 = vpop.f32.mrb[0].mxu0
        %527 = vdwg.mxu0
        %v528 = vadd.f32 %v514, %v517
        %v529 = vadd.f32 %v528, %v522
        %v530 = vadd.f32 %v529, %v525
        %v531 = vrot.slane %v530, 4
        %v532 = vadd.f32 %v530, %v531
        %v533 = vrot.slane %v532, 2
        %v534 = vadd.f32 %v532, %v533
        %v535 = vrot.slane %v534, 1
        %v536 = vadd.f32 %v534, %v535
        %v537 = vmul.f32 %v536, 0.03125
        %v538 = vmul.f32 %v514, %v514
        %v539 = vmul.f32 %v517, %v517
        %v540 = vmul.f32 %v522, %v522
        %v541 = vmul.f32 %v525, %v525
        %v542 = vadd.f32 %v538, %v539
        %v543 = vadd.f32 %v542, %v540
        %v544 = vadd.f32 %v543, %v541
        %v545 = vrot.slane %v544, 4
        %v546 = vadd.f32 %v544, %v545
        %v547 = vrot.slane %v546, 2
        %v548 = vadd.f32 %v546, %v547
        %v549 = vrot.slane %v548, 1
        %v550 = vadd.f32 %v548, %v549
        %v551 = vmul.f32 %v550, 0.03125
        %v552 = vmul.f32 %v537, %v537
        %v553 = vsub.f32 %v551, %v552
        %v554 = vmax.f32 %v553, 0.0
        %s555 = scalar_lea.vmem %s2, %s318
        %v556 = vld [vmem:[%s555] sm:$0x1]
        %s557 = scalar_lea.vmem %s3, %s318
        %v558 = vld [vmem:[%s557] sm:$0x1]
        %v559 = vadd.f32 %v554, 1e-05
        %v560 = vrsqrt.pop %v559
        %v561 = vmul.f32 %v556, %v560
        %v562 = vmul.f32 %v537, %v561
        %v563 = vsub.f32 %v558, %v562
        %v564 = vlaneseq
        %v565 = vshrl.u32 %v564, 7
        %v566 = vsub.s32 0, %v565
        %v567 = vrot.slane %v561, %v566
        %v568 = vmul.f32 %v514, %v567
        %v569 = vmul.f32 %v517, %v567
        %v570 = vmul.f32 %v522, %v567
        %v571 = vmul.f32 %v525, %v567
        %v572 = vlaneseq
        %v573 = vshrl.u32 %v572, 7
        %v574 = vsub.s32 0, %v573
        %v575 = vrot.slane %v563, %v574
        %v576 = vadd.f32 %v568, %v575
        %v577 = vadd.f32 %v569, %v575
        %v578 = vadd.f32 %v570, %v575
        %v579 = vadd.f32 %v571, %v575
        %v580 = vmax.f32 %v576, 0.0
        %v581 = vmax.f32 %v577, 0.0
        %v582 = vmax.f32 %v578, 0.0
        %v583 = vmax.f32 %v579, 0.0
        %v584 = vld [vmem:[#allocation8] sm:$0xff]
        %v585 = vld [vmem:[#allocation8 + $0x8] sm:$0xff]
        %v586 = vld [vmem:[#allocation8 + $0x10] sm:$0xff]
        %v587 = vld [vmem:[#allocation8 + $0x18] sm:$0xff]
        %v588 = vpack.c.bf16 %v581, %v580
        %v589 = vpack.c.bf16 %v583, %v582
        %v590 = vld [vmem:[%s284] sm:$0xf]
        %v591 = vld [vmem:[%s284 + $0x4] sm:$0xf]
        %v592 = vld [vmem:[%s284 + $0x8] sm:$0xf]
        %v593 = vld [vmem:[%s284 + $0xc] sm:$0xf]
        %v594 = vld [vmem:[%s284 + $0x10] sm:$0xf]
        %v595 = vld [vmem:[%s284 + $0x14] sm:$0xf]
        %v596 = vld [vmem:[%s284 + $0x18] sm:$0xf]
        %v597 = vld [vmem:[%s284 + $0x1c] sm:$0xf]
        %v598 = vld [vmem:[%s284 + $0x20] sm:$0xf]
        %v599 = vld [vmem:[%s284 + $0x24] sm:$0xf]
        %v600 = vld [vmem:[%s284 + $0x28] sm:$0xf]
        %v601 = vld [vmem:[%s284 + $0x2c] sm:$0xf]
        %v602 = vld [vmem:[%s284 + $0x30] sm:$0xf]
        %v603 = vld [vmem:[%s284 + $0x34] sm:$0xf]
        %v604 = vld [vmem:[%s284 + $0x38] sm:$0xf]
        %v605 = vld [vmem:[%s284 + $0x3c] sm:$0xf]
        %v622 = vunpack.c.l.b16 %v590
        %v623 = vunpack.c.l.b16 %v591
        %v624 = vunpack.c.l.b16 %v592
        %v625 = vunpack.c.l.b16 %v593
        %v626 = vunpack.c.l.b16 %v594
        %v627 = vunpack.c.l.b16 %v595
        %v628 = vunpack.c.l.b16 %v596
        %v629 = vunpack.c.l.b16 %v597
        %v630 = vunpack.c.l.b16 %v598
        %v631 = vunpack.c.l.b16 %v599
        %v632 = vunpack.c.l.b16 %v600
        %v633 = vunpack.c.l.b16 %v601
        %v634 = vunpack.c.l.b16 %v602
        %v635 = vunpack.c.l.b16 %v603
        %v636 = vunpack.c.l.b16 %v604
        %v637 = vunpack.c.l.b16 %v605
        %v638 = vpack.c.b16 %v623, %v622
        %v639 = vpack.c.b16 %v625, %v624
        %v640 = vpack.c.b16 %v627, %v626
        %v641 = vpack.c.b16 %v629, %v628
        %v642 = vpack.c.b16 %v631, %v630
        %v643 = vpack.c.b16 %v633, %v632
        %v644 = vpack.c.b16 %v635, %v634
        %v645 = vpack.c.b16 %v637, %v636
        %654 = vmatprep.subr.bf16.mxu0 0
        %655 = vmatpush1.bf16.msra.mxu0 %v638
        %656 = vmatprep.subr.bf16.mxu0 0
        %657 = vmatpush1.bf16.msra.mxu0 %v639
        %658 = vmatprep.subr.bf16.mxu0 0
        %659 = vmatpush1.bf16.msra.mxu0 %v640
        %660 = vmatprep.subr.bf16.mxu0 0
        %661 = vmatpush1.bf16.msra.mxu0 %v641
        %662 = vmatprep.subr.bf16.mxu0 0
        %663 = vmatpush1.bf16.msra.mxu0 %v642
        %664 = vmatprep.subr.bf16.mxu0 0
        %665 = vmatpush1.bf16.msra.mxu0 %v643
        %666 = vmatprep.subr.bf16.mxu0 0
        %667 = vmatpush1.bf16.msra.mxu0 %v644
        %668 = vmatprep.subr.bf16.mxu0 0
        %669 = vmatpush1.bf16.msra.mxu0 %v645
        %670 = vmatprep.subr.bf16.mxu0 0
        %671 = vmatpush1.bf16.msra.mxu0 0
        %672 = vmatprep.subr.bf16.mxu0 0
        %673 = vmatpush1.bf16.msra.mxu0 0
        %674 = vmatprep.subr.bf16.mxu0 0
        %675 = vmatpush1.bf16.msra.mxu0 0
        %676 = vmatprep.subr.bf16.mxu0 0
        %677 = vmatpush1.bf16.msra.mxu0 0
        %678 = vmatprep.subr.bf16.mxu0 0
        %679 = vmatpush1.bf16.msra.mxu0 0
        %680 = vmatprep.subr.bf16.mxu0 0
        %681 = vmatpush1.bf16.msra.mxu0 0
        %682 = vmatprep.subr.bf16.mxu0 0
        %683 = vmatpush1.bf16.msra.mxu0 0
        %684 = vmatprep.subr.bf16.mxu0 0
        %685 = vmatpush1.bf16.msra.mxu0 0
        %686 = vmatprep.mubr.bf16.mxu0 0
        %687 = vmatmul.mubr.bf16.gmra.mrb[0].mxu0 %v588
        %v688 = vpop.f32.mrb[0].mxu0
        %v689 = vadd.f32 0.0, %v688
        %v690 = vpop.f32.mrb[0].mxu0
        %v691 = vpop.f32.mrb[0].mxu0
        %v692 = vadd.f32 0.0, %v691
        %v693 = vpop.f32.mrb[0].mxu0
        %694 = vmatprep.mubr.bf16.mxu0 0
        %695 = vmatmul.mubr.bf16.gmra.mrb[0].mxu0 %v589
        %v696 = vpop.f32.mrb[0].mxu0
        %v697 = vadd.f32 0.0, %v696
        %v698 = vpop.f32.mrb[0].mxu0
        %v699 = vpop.f32.mrb[0].mxu0
        %v700 = vadd.f32 0.0, %v699
        %v701 = vpop.f32.mrb[0].mxu0
        %702 = vdwg.mxu0
        %v703 = vadd.f32 %v584, %v689
        %v704 = vadd.f32 %v585, %v692
        %v705 = vadd.f32 %v586, %v697
        %v706 = vadd.f32 %v587, %v700
        %707 = vst [vmem:[#allocation8] sm:$0xff] %v703
        %708 = vst [vmem:[#allocation8 + $0x8] sm:$0xff] %v704
        %709 = vst [vmem:[#allocation8 + $0x10] sm:$0xff] %v705
        %710 = vst [vmem:[#allocation8 + $0x18] sm:$0xff] %v706
        // Predicated region
        $region57: #{tpu_custom_call.1} parent=39 // pred_check
          %p711 = pneg %p174
        $region58: #{tpu_custom_call.1} parent=39 // pred_check_branch
          %713 = sbr.rel (%p711) target = $region60
        $region59: #{tpu_custom_call.1} parent=39 // pred_region
          %s715 = ssub.s32 512, 512
          %716 = vsyncadd [#allocation4], %s715
          %s717 = smul.addr %s25, 4
          %s718 = smul.addr %s717, 128
          %s719 = scalar_lea.hbm %s5, %s718
          %s720 = sshll.u32 [#allocation8], 4
          %s721 = int_to_ptr.vmem [resolvable:$true] %s720
          %726 = dma.vmem_to_hbm [thread:$0]  %s721, 512, %s719, [#allocation4], 128, 128, 8
        $region60: #{tpu_custom_call.1} parent=39 // pred_fallthru
          _
        // Predicated region
        $region61: #{tpu_custom_call.1} parent=39 // pred_check
          %p727 = pneg %p174
        $region62: #{tpu_custom_call.1} parent=39 // pred_check_branch
          %729 = sbr.rel (%p727) target = $region64
        $region63: #{tpu_custom_call.1} parent=39 // pred_region
          %730 = dma.done [#allocation4], 512
        $region64: #{tpu_custom_call.1} parent=39 // pred_fallthru
          _
      $region40: #{tpu_custom_call.1} parent=5 // pred_fallthru
        _
      %p731 = scmp.le.s32.totalorder 2, %s16
      // Predicated region
      $region65: #{tpu_custom_call.1} parent=5 // pred_check
        %p732 = pneg %p731
      $region66: #{tpu_custom_call.1} parent=5 // pred_check_branch
        %734 = sbr.rel (%p732) target = $region68
      $region67: #{tpu_custom_call.1} parent=5 // pred_region
        %s735 = ssub.s32 %s16, 2
      $region68: #{tpu_custom_call.1} parent=5 // pred_fallthru
        _
    $region6: #{tpu_custom_call.1} parent=1 // loop_footer
      %s20 = sadd.s32 1, %s16
    $region7: #{tpu_custom_call.1} parent=1 // loop_footer_branch
      %15 = sbr.rel target = $region3
    $region8: #{tpu_custom_call.1} parent=1 // loop_exit
      _
    %736 = vsyncpa [#allocation3], 1
    %s737 = scalar_lea.sflag [#allocation3], 1
    %738 = vsyncpa %s737, 1
    %739 = vsyncpa [#allocation6], 1
    %s740 = scalar_lea.sflag [#allocation6], 1
    %741 = vsyncpa %s740, 1
    %742 = vsyncpa [#allocation4], 1
    %s743 = scalar_lea.sflag [#allocation4], 1
    %744 = vsyncpa %s743, 1

// kernel: tpu_custom_call.1
$region0: #{tpu_custom_call.1}
  #allocation0 [shape = 'u32[]', space=smem, size = 0x4, offset = 0x4, fixed_abs, tag = 'smem constant byte address 0x4 - core index']
  #allocation1 [shape = 'u32[144,128]{1,0:T(1,128)}', space=vmem, size = 0x12000, scoped, tag = 'internal scratch']
  %s0 = inlined_call_operand.hbm [shape: bf16[32,256], index: 0, kind: input, shape index: {}]
  %s1 = inlined_call_operand.hbm [shape: bf16[256,512], index: 1, kind: input, shape index: {}]
  %s2 = inlined_call_operand.vmem [shape: f32[4,128], index: 2, kind: input, shape index: {}]
  %s3 = inlined_call_operand.vmem [shape: f32[4,128], index: 3, kind: input, shape index: {}]
  %s4 = inlined_call_operand.hbm [shape: bf16[512,128], index: 4, kind: input, shape index: {}]
  %s5 = inlined_call_operand.hbm [shape: f32[2,32,128], index: 5, kind: output, shape index: {}]
  %s6 = sld [smem:[#allocation0]]
  $region69: #{tpu_custom_call.1} parent=0
    _
  %s8 = ssub.s32 1, %s6
  %s9 = scalar_select 0, %s8, %s6
  $region1: #{tpu_custom_call.1} parent=0
    #allocation2 [shape = 'u8[16384]{0}', space=vmem, size = 0x4000, scoped, tag = 'input window, operand 0, single buffered']
    #allocation3 [shape = 's32[2]{0}', space=sflag, size = 0x8, scoped, tag = 'scoped memory for tpu_custom_call.1']
    #allocation4 [shape = 's32[2]{0}', space=sflag, size = 0x8, scoped, tag = 'scoped memory for tpu_custom_call.1']
    #allocation5 [shape = 'u8[131072]{0}', space=vmem, size = 0x20000, scoped, tag = 'input window, operand 1']
    #allocation6 [shape = 's32[2]{0}', space=sflag, size = 0x8, scoped, tag = 'scoped memory for tpu_custom_call.1']
    #allocation7 [shape = 'u8[65536]{0}', space=vmem, size = 0x10000, scoped, tag = 'input window, operand 4']
    #allocation8 [shape = 'u8[32768]{0}', space=vmem, size = 0x8000, scoped, tag = 'output window, operand 0']
    %10 = vsyncpa [#allocation3], 0
    %11 = vsyncpa [#allocation6], 0
    %s12 = scalar_lea.sflag [#allocation6], 1
    %13 = vsyncpa %s12, 0
    %14 = vsyncpa [#allocation4], 0
    %s15 = scalar_lea.sflag [#allocation4], 1
    %16 = vsyncpa %s15, 0
    loop: start=0, step=1, limit=6
    $region2: #{tpu_custom_call.1} parent=1 // loop_pre_header
      _
    $region3: #{tpu_custom_call.1} parent=1 // loop_header
      %s18 = sphi 0, %s22
      %p19 = scmp.ge.s32.totalorder %s18, 6
      %s25 = sphi 0, %s37
      %s26 = sphi 0, %s33
      %s27 = sphi 0, %s25
      %s28 = sphi 0, %s26
      %s29 = sphi 0, %s27
      %s30 = sphi 0, %s28
      %s38 = sphi 0, %s38
      %s40 = sphi 0, %s38
      %s41 = sphi 0, %s40
      %s55 = sphi 0, %s41
      %s65 = sphi 0, %s67
      %s68 = sphi 0, %s65
      %s69 = sphi 0, %s68
      %s85 = sphi 0, %s69
      %s89 = sphi 0, %s89
      %s91 = sphi 0, %s89
      %s92 = sphi 0, %s91
      %s106 = sphi 0, %s92
      %s110 = sphi 0, %s110
      %s112 = sphi 0, %s110
      %s113 = sphi 0, %s112
      %s127 = sphi 0, %s113
      %s137 = sphi 0, %s139
      %s140 = sphi 0, %s137
      %s141 = sphi 0, %s140
      %s157 = sphi 0, %s141
      %s163 = sphi 0, %s165
      %s166 = sphi 0, %s163
      %s167 = sphi 0, %s166
      %s183 = sphi 0, %s167
    $region4: #{tpu_custom_call.1} parent=1 // loop_header_branch
      %21 = sbr.rel (%p19) target = $region8
    $region5: #{tpu_custom_call.1} parent=1 // loop_body
      %s23 = ssub.s32 %s18, 1
      %s24 = ssub.s32 %s18, 2
      %s31 = sadd.s32 1, %s26
      %p32 = scmp.ge.s32.totalorder %s31, 2
      %s33 = scalar_select %p32, 0, %s31
      %s34 = sadd.s32 1, %s25
      %s35 = scalar_select %p32, %s34, %s25
      %p36 = scmp.ge.s32.totalorder %s35, 2
      %s37 = scalar_select %p36, 0, %s35
      %s39 = sadd.s32 %s38, 1
      %p42 = scmp.eq.s32.totalorder %s18, 3
      %p43 = scmp.ne.s32.totalorder %s38, %s40
      %p44 = scmp.eq.s32.totalorder %s18, 0
      %p45 = por %p43, %p44
      %p46 = scmp.ne.s32.totalorder %s38, %s40
      %p47 = scmp.eq.s32.totalorder %s23, 3
      %p48 = por %p46, %p47
      %p49 = scmp.ne.s32.totalorder %s40, %s41
      %p50 = scmp.eq.s32.totalorder %s23, 0
      %p51 = por %p49, %p50
      %p52 = scmp.ne.s32.totalorder %s40, %s41
      %p53 = scmp.eq.s32.totalorder %s24, 3
      %p54 = por %p52, %p53
      %p56 = scmp.ne.s32.totalorder %s41, %s55
      %p57 = scmp.eq.s32.totalorder %s24, 0
      %p58 = por %p56, %p57
      %s59 = smul.u32 %s25, 2
      %s60 = sadd.s32 %s59, %s26
      %s61 = smul.u32 %s37, 2
      %s62 = sadd.s32 %s61, %s33
      %s63 = ssub.s32 %s60, %s62
      %p64 = scmp.eq.s32.totalorder %s63, 0
      %s66 = sadd.s32 %s65, 1
      %s67 = scalar_select %p64, %s65, %s66
      %p70 = pneg %p64
      %p71 = scmp.eq.s32.totalorder %s18, 3
      %p72 = por %p70, %p71
      %p73 = scmp.ne.s32.totalorder %s65, %s68
      %p74 = scmp.eq.s32.totalorder %s18, 0
      %p75 = por %p73, %p74
      %p76 = scmp.ne.s32.totalorder %s65, %s68
      %p77 = scmp.eq.s32.totalorder %s23, 3
      %p78 = por %p76, %p77
      %p79 = scmp.ne.s32.totalorder %s68, %s69
      %p80 = scmp.eq.s32.totalorder %s23, 0
      %p81 = por %p79, %p80
      %p82 = scmp.ne.s32.totalorder %s68, %s69
      %p83 = scmp.eq.s32.totalorder %s24, 3
      %p84 = por %p82, %p83
      %p86 = scmp.ne.s32.totalorder %s69, %s85
      %p87 = scmp.eq.s32.totalorder %s24, 0
      %p88 = por %p86, %p87
      %s90 = sadd.s32 %s89, 1
      %p93 = scmp.eq.s32.totalorder %s18, 3
      %p94 = scmp.ne.s32.totalorder %s89, %s91
      %p95 = scmp.eq.s32.totalorder %s18, 0
      %p96 = por %p94, %p95
      %p97 = scmp.ne.s32.totalorder %s89, %s91
      %p98 = scmp.eq.s32.totalorder %s23, 3
      %p99 = por %p97, %p98
      %p100 = scmp.ne.s32.totalorder %s91, %s92
      %p101 = scmp.eq.s32.totalorder %s23, 0
      %p102 = por %p100, %p101
      %p103 = scmp.ne.s32.totalorder %s91, %s92
      %p104 = scmp.eq.s32.totalorder %s24, 3
      %p105 = por %p103, %p104
      %p107 = scmp.ne.s32.totalorder %s92, %s106
      %p108 = scmp.eq.s32.totalorder %s24, 0
      %p109 = por %p107, %p108
      %s111 = sadd.s32 %s110, 1
      %p114 = scmp.eq.s32.totalorder %s18, 3
      %p115 = scmp.ne.s32.totalorder %s110, %s112
      %p116 = scmp.eq.s32.totalorder %s18, 0
      %p117 = por %p115, %p116
      %p118 = scmp.ne.s32.totalorder %s110, %s112
      %p119 = scmp.eq.s32.totalorder %s23, 3
      %p120 = por %p118, %p119
      %p121 = scmp.ne.s32.totalorder %s112, %s113
      %p122 = scmp.eq.s32.totalorder %s23, 0
      %p123 = por %p121, %p122
      %p124 = scmp.ne.s32.totalorder %s112, %s113
      %p125 = scmp.eq.s32.totalorder %s24, 3
      %p126 = por %p124, %p125
      %p128 = scmp.ne.s32.totalorder %s113, %s127
      %p129 = scmp.eq.s32.totalorder %s24, 0
      %p130 = por %p128, %p129
      %s131 = smul.u32 %s25, 2
      %s132 = sadd.s32 %s131, %s26
      %s133 = smul.u32 %s37, 2
      %s134 = sadd.s32 %s133, %s33
      %s135 = ssub.s32 %s132, %s134
      %p136 = scmp.eq.s32.totalorder %s135, 0
      %s138 = sadd.s32 %s137, 1
      %s139 = scalar_select %p136, %s137, %s138
      %p142 = pneg %p136
      %p143 = scmp.eq.s32.totalorder %s18, 3
      %p144 = por %p142, %p143
      %p145 = scmp.ne.s32.totalorder %s137, %s140
      %p146 = scmp.eq.s32.totalorder %s18, 0
      %p147 = por %p145, %p146
      %p148 = scmp.ne.s32.totalorder %s137, %s140
      %p149 = scmp.eq.s32.totalorder %s23, 3
      %p150 = por %p148, %p149
      %p151 = scmp.ne.s32.totalorder %s140, %s141
      %p152 = scmp.eq.s32.totalorder %s23, 0
      %p153 = por %p151, %p152
      %p154 = scmp.ne.s32.totalorder %s140, %s141
      %p155 = scmp.eq.s32.totalorder %s24, 3
      %p156 = por %p154, %p155
      %p158 = scmp.ne.s32.totalorder %s141, %s157
      %p159 = scmp.eq.s32.totalorder %s24, 0
      %p160 = por %p158, %p159
      %s161 = ssub.s32 %s25, %s37
      %p162 = scmp.eq.s32.totalorder %s161, 0
      %s164 = sadd.s32 %s163, 1
      %s165 = scalar_select %p162, %s163, %s164
      %p168 = pneg %p162
      %p169 = scmp.eq.s32.totalorder %s18, 3
      %p170 = por %p168, %p169
      %p171 = scmp.ne.s32.totalorder %s163, %s166
      %p172 = scmp.eq.s32.totalorder %s18, 0
      %p173 = por %p171, %p172
      %p174 = scmp.ne.s32.totalorder %s163, %s166
      %p175 = scmp.eq.s32.totalorder %s23, 3
      %p176 = por %p174, %p175
      %p177 = scmp.ne.s32.totalorder %s166, %s167
      %p178 = scmp.eq.s32.totalorder %s23, 0
      %p179 = por %p177, %p178
      %p180 = scmp.ne.s32.totalorder %s166, %s167
      %p181 = scmp.eq.s32.totalorder %s24, 3
      %p182 = por %p180, %p181
      %p184 = scmp.ne.s32.totalorder %s167, %s183
      %p185 = scmp.eq.s32.totalorder %s24, 0
      %p186 = por %p184, %p185
      %p187 = scmp.le.s32.totalorder 1, %s18
      %p188 = scmp.lt.s32.totalorder %s18, 5
      %p189 = pnand %p187, %p188
      %p190 = pneg %p189
      // Predicated region
      $region9: #{tpu_custom_call.1} parent=5 // pred_check
        _
      $region10: #{tpu_custom_call.1} parent=5 // pred_check_branch
        %192 = sbr.rel (%p189) target = $region12
      $region11: #{tpu_custom_call.1} parent=5 // pred_region
        %s193 = ssub.s32 %s18, 1
        // Predicated region
        $region13: #{tpu_custom_call.1} parent=11 // pred_check
          %p194 = pneg %p51
        $region14: #{tpu_custom_call.1} parent=11 // pred_check_branch
          %196 = sbr.rel (%p194) target = $region16
        $region15: #{tpu_custom_call.1} parent=11 // pred_region
          %s198 = ssub.s32 512, 512
          %199 = vsyncadd [#allocation3], %s198
          %s200 = sshll.u32 [#allocation2], 4
          %s201 = int_to_ptr.vmem [resolvable:$true] %s200
          %206 = dma.hbm_to_vmem [thread:$0]  %s0, 512, %s201, [#allocation3], 128, 128, 8
        $region16: #{tpu_custom_call.1} parent=11 // pred_fallthru
          _
        // Predicated region
        $region17: #{tpu_custom_call.1} parent=11 // pred_check
          %p207 = pneg %p102
        $region18: #{tpu_custom_call.1} parent=11 // pred_check_branch
          %209 = sbr.rel (%p207) target = $region20
        $region19: #{tpu_custom_call.1} parent=11 // pred_region
          _
        $region20: #{tpu_custom_call.1} parent=11 // pred_fallthru
          _
        // Predicated region
        $region21: #{tpu_custom_call.1} parent=11 // pred_check
          %p210 = pneg %p123
        $region22: #{tpu_custom_call.1} parent=11 // pred_check_branch
          %212 = sbr.rel (%p210) target = $region24
        $region23: #{tpu_custom_call.1} parent=11 // pred_region
          _
        $region24: #{tpu_custom_call.1} parent=11 // pred_fallthru
          _
      $region12: #{tpu_custom_call.1} parent=5 // pred_fallthru
        _
      %p213 = scmp.lt.s32.totalorder %s18, 4
      // Predicated region
      $region25: #{tpu_custom_call.1} parent=5 // pred_check
        %p214 = pneg %p213
      $region26: #{tpu_custom_call.1} parent=5 // pred_check_branch
        %216 = sbr.rel (%p214) target = $region28
      $region27: #{tpu_custom_call.1} parent=5 // pred_region
        // Predicated region
        $region29: #{tpu_custom_call.1} parent=27 // pred_check
          %p217 = pneg %p75
        $region30: #{tpu_custom_call.1} parent=27 // pred_check_branch
          %219 = sbr.rel (%p217) target = $region32
        $region31: #{tpu_custom_call.1} parent=27 // pred_region
          %s220 = sand.u32 %s18, 1
          %s221 = scalar_lea.sflag [#allocation6], %s220
          %s222 = sand.u32 %s65, 1
          %s223 = smul.addr %s222, 128
          %s224 = scalar_lea.vmem [#allocation5], %s223
          %s225 = smul.u32 %s25, 2
          %s226 = sadd.s32 %s225, %s26
          %s228 = ssub.s32 2048, 2048
          %229 = vsyncadd %s221, %s228
          %s230 = smul.addr %s226, 64
          %s231 = scalar_lea.hbm %s1, %s230
          %s232 = sshll.u32 %s224, 4
          %s233 = int_to_ptr.vmem [resolvable:$true] %s232
          %238 = dma.hbm_to_vmem [thread:$0]  %s231, 2048, %s233, %s221, 256, 64, 4
        $region32: #{tpu_custom_call.1} parent=27 // pred_fallthru
          _
        // Predicated region
        $region33: #{tpu_custom_call.1} parent=27 // pred_check
          %p239 = pneg %p147
        $region34: #{tpu_custom_call.1} parent=27 // pred_check_branch
          %241 = sbr.rel (%p239) target = $region36
        $region35: #{tpu_custom_call.1} parent=27 // pred_region
          %s242 = sand.u32 %s18, 1
          %s243 = scalar_lea.sflag [#allocation6], %s242
          %s244 = sand.u32 %s137, 1
          %s245 = smul.addr %s244, 64
          %s246 = scalar_lea.vmem [#allocation7], %s245
          %s247 = smul.u32 %s25, 2
          %s248 = sadd.s32 %s247, %s26
          %s249 = smul.u32 16, %s248
          %s251 = ssub.s32 1024, 1024
          %252 = vsyncadd %s243, %s251
          %s253 = smul.addr %s249, 64
          %s254 = scalar_lea.hbm %s4, %s253
          %s255 = sshll.u32 %s246, 4
          %s256 = int_to_ptr.vmem [resolvable:$true] %s255
          %261 = dma.hbm_to_vmem [thread:$0]  %s254, 1024, %s256, %s243, 64, 64, 4
        $region36: #{tpu_custom_call.1} parent=27 // pred_fallthru
          _
      $region28: #{tpu_custom_call.1} parent=5 // pred_fallthru
        _
      %p262 = scmp.le.s32.totalorder 1, %s18
      %p263 = scmp.lt.s32.totalorder %s18, 5
      %p264 = pnand %p262, %p263
      %p265 = pneg %p264
      // Predicated region
      $region37: #{tpu_custom_call.1} parent=5 // pred_check
        _
      $region38: #{tpu_custom_call.1} parent=5 // pred_check_branch
        %267 = sbr.rel (%p264) target = $region40
      $region39: #{tpu_custom_call.1} parent=5 // pred_region
        %s268 = ssub.s32 %s18, 1
        // Predicated region
        $region41: #{tpu_custom_call.1} parent=39 // pred_check
          %p269 = pneg %p51
        $region42: #{tpu_custom_call.1} parent=39 // pred_check_branch
          %271 = sbr.rel (%p269) target = $region44
        $region43: #{tpu_custom_call.1} parent=39 // pred_region
          %272 = dma.done [#allocation3], 512
        $region44: #{tpu_custom_call.1} parent=39 // pred_fallthru
          _
        %s273 = sand.u32 %s23, 1
        %s274 = scalar_lea.sflag [#allocation6], %s273
        %s275 = sand.u32 %s68, 1
        %s276 = smul.addr %s275, 128
        %s277 = scalar_lea.vmem [#allocation5], %s276
        // Predicated region
        $region45: #{tpu_custom_call.1} parent=39 // pred_check
          %p278 = pneg %p81
        $region46: #{tpu_custom_call.1} parent=39 // pred_check_branch
          %280 = sbr.rel (%p278) target = $region48
        $region47: #{tpu_custom_call.1} parent=39 // pred_region
          %281 = dma.done %s274, 2048
        $region48: #{tpu_custom_call.1} parent=39 // pred_fallthru
          _
        %s282 = sand.u32 %s23, 1
        %s283 = scalar_lea.sflag [#allocation6], %s282
        %s284 = sand.u32 %s140, 1
        %s285 = smul.addr %s284, 64
        %s286 = scalar_lea.vmem [#allocation7], %s285
        // Predicated region
        $region49: #{tpu_custom_call.1} parent=39 // pred_check
          %p287 = pneg %p153
        $region50: #{tpu_custom_call.1} parent=39 // pred_check_branch
          %289 = sbr.rel (%p287) target = $region52
        $region51: #{tpu_custom_call.1} parent=39 // pred_region
          %290 = dma.done %s283, 1024
        $region52: #{tpu_custom_call.1} parent=39 // pred_fallthru
          _
        %p291 = pneg %p51
        %p292 = pneg %p48
        %s293 = sand.u32 %s23, 1
        %s294 = scalar_lea.sflag [#allocation6], %s293
        %s295 = sand.u32 %s68, 1
        %s296 = smul.addr %s295, 128
        %s297 = scalar_lea.vmem [#allocation5], %s296
        %p298 = pneg %p81
        %p299 = pneg %p78
        %p300 = pneg %p102
        %p301 = pneg %p99
        %p302 = pneg %p123
        %p303 = pneg %p120
        %s304 = sand.u32 %s23, 1
        %s305 = scalar_lea.sflag [#allocation6], %s304
        %s306 = sand.u32 %s140, 1
        %s307 = smul.addr %s306, 64
        %s308 = scalar_lea.vmem [#allocation7], %s307
        %p309 = pneg %p153
        %p310 = pneg %p150
        %p311 = pneg %p179
        %p312 = pneg %p176
        %s313 = sand.u32 %s166, 1
        %s314 = scalar_lea.sflag [#allocation4], %s313
        %s315 = sand.u32 %s166, 1
        %s316 = smul.addr %s315, 32
        %s317 = scalar_lea.vmem [#allocation8], %s316
        %s318 = smul.u32 %s27, 2
        %s319 = sadd.s32 %s318, %s28
        %s320 = smul.u32 %s27, 2
        %s321 = sadd.s32 %s320, %s28
        %s322 = smul.u32 16, %s321
        %s324 = smul.u32 %s27, 2
        %s325 = sadd.s32 %s324, %s28
        %p326 = scmp.eq.s32.totalorder %s28, 0
        // Predicated region
        $region53: #{tpu_custom_call.1} parent=39 // pred_check
          %p327 = pneg %p326
        $region54: #{tpu_custom_call.1} parent=39 // pred_check_branch
          %329 = sbr.rel (%p327) target = $region56
        $region55: #{tpu_custom_call.1} parent=39 // pred_region
          %330 = vst [vmem:[%s317] sm:$0xff] 0.0
          %331 = vst [vmem:[%s317 + $0x8] sm:$0xff] 0.0
          %332 = vst [vmem:[%s317 + $0x10] sm:$0xff] 0.0
          %333 = vst [vmem:[%s317 + $0x18] sm:$0xff] 0.0
        $region56: #{tpu_custom_call.1} parent=39 // pred_fallthru
          _
        %v334 = vld [vmem:[#allocation2] sm:$0xff]
        %v335 = vld [vmem:[#allocation2 + $0x8] sm:$0xff]
        %v336 = vld [vmem:[#allocation2 + $0x10] sm:$0xff]
        %v337 = vld [vmem:[#allocation2 + $0x18] sm:$0xff]
        %v338 = vld [vmem:[%s277] sm:$0xf]
        %v339 = vld [vmem:[%s277 + $0x4] sm:$0xf]
        %v340 = vld [vmem:[%s277 + $0x8] sm:$0xf]
        %v341 = vld [vmem:[%s277 + $0xc] sm:$0xf]
        %v342 = vld [vmem:[%s277 + $0x10] sm:$0xf]
        %v343 = vld [vmem:[%s277 + $0x14] sm:$0xf]
        %v344 = vld [vmem:[%s277 + $0x18] sm:$0xf]
        %v345 = vld [vmem:[%s277 + $0x1c] sm:$0xf]
        %v346 = vld [vmem:[%s277 + $0x20] sm:$0xf]
        %v347 = vld [vmem:[%s277 + $0x24] sm:$0xf]
        %v348 = vld [vmem:[%s277 + $0x28] sm:$0xf]
        %v349 = vld [vmem:[%s277 + $0x2c] sm:$0xf]
        %v350 = vld [vmem:[%s277 + $0x30] sm:$0xf]
        %v351 = vld [vmem:[%s277 + $0x34] sm:$0xf]
        %v352 = vld [vmem:[%s277 + $0x38] sm:$0xf]
        %v353 = vld [vmem:[%s277 + $0x3c] sm:$0xf]
        %v354 = vld [vmem:[%s277 + $0x40] sm:$0xf]
        %v355 = vld [vmem:[%s277 + $0x44] sm:$0xf]
        %v356 = vld [vmem:[%s277 + $0x48] sm:$0xf]
        %v357 = vld [vmem:[%s277 + $0x4c] sm:$0xf]
        %v358 = vld [vmem:[%s277 + $0x50] sm:$0xf]
        %v359 = vld [vmem:[%s277 + $0x54] sm:$0xf]
        %v360 = vld [vmem:[%s277 + $0x58] sm:$0xf]
        %v361 = vld [vmem:[%s277 + $0x5c] sm:$0xf]
        %v362 = vld [vmem:[%s277 + $0x60] sm:$0xf]
        %v363 = vld [vmem:[%s277 + $0x64] sm:$0xf]
        %v364 = vld [vmem:[%s277 + $0x68] sm:$0xf]
        %v365 = vld [vmem:[%s277 + $0x6c] sm:$0xf]
        %v366 = vld [vmem:[%s277 + $0x70] sm:$0xf]
        %v367 = vld [vmem:[%s277 + $0x74] sm:$0xf]
        %v368 = vld [vmem:[%s277 + $0x78] sm:$0xf]
        %v369 = vld [vmem:[%s277 + $0x7c] sm:$0xf]
        %v374 = vunpack.c.l.b16 %v334
        %v375 = vunpack.c.h.b16 %v334
        %v376 = vunpack.c.l.b16 %v335
        %v377 = vunpack.c.h.b16 %v335
        %v378 = vunpack.c.l.b16 %v336
        %v379 = vunpack.c.h.b16 %v336
        %v380 = vunpack.c.l.b16 %v337
        %v381 = vunpack.c.h.b16 %v337
        %v382 = vpack.c.b16 %v376, %v374
        %v383 = vpack.c.b16 %v377, %v375
        %v384 = vpack.c.b16 %v380, %v378
        %v385 = vpack.c.b16 %v381, %v379
        %v422 = vunpack.c.l.b16 %v338
        %v423 = vunpack.c.l.b16 %v339
        %v424 = vunpack.c.l.b16 %v340
        %v425 = vunpack.c.l.b16 %v341
        %v426 = vunpack.c.l.b16 %v342
        %v427 = vunpack.c.l.b16 %v343
        %v428 = vunpack.c.l.b16 %v344
        %v429 = vunpack.c.l.b16 %v345
        %v430 = vunpack.c.l.b16 %v346
        %v431 = vunpack.c.l.b16 %v347
        %v432 = vunpack.c.l.b16 %v348
        %v433 = vunpack.c.l.b16 %v349
        %v434 = vunpack.c.l.b16 %v350
        %v435 = vunpack.c.l.b16 %v351
        %v436 = vunpack.c.l.b16 %v352
        %v437 = vunpack.c.l.b16 %v353
        %v438 = vunpack.c.l.b16 %v354
        %v439 = vunpack.c.l.b16 %v355
        %v440 = vunpack.c.l.b16 %v356
        %v441 = vunpack.c.l.b16 %v357
        %v442 = vunpack.c.l.b16 %v358
        %v443 = vunpack.c.l.b16 %v359
        %v444 = vunpack.c.l.b16 %v360
        %v445 = vunpack.c.l.b16 %v361
        %v446 = vunpack.c.l.b16 %v362
        %v447 = vunpack.c.l.b16 %v363
        %v448 = vunpack.c.l.b16 %v364
        %v449 = vunpack.c.l.b16 %v365
        %v450 = vunpack.c.l.b16 %v366
        %v451 = vunpack.c.l.b16 %v367
        %v452 = vunpack.c.l.b16 %v368
        %v453 = vunpack.c.l.b16 %v369
        %v454 = vpack.c.b16 %v423, %v422
        %v455 = vpack.c.b16 %v425, %v424
        %v456 = vpack.c.b16 %v427, %v426
        %v457 = vpack.c.b16 %v429, %v428
        %v458 = vpack.c.b16 %v431, %v430
        %v459 = vpack.c.b16 %v433, %v432
        %v460 = vpack.c.b16 %v435, %v434
        %v461 = vpack.c.b16 %v437, %v436
        %v462 = vpack.c.b16 %v439, %v438
        %v463 = vpack.c.b16 %v441, %v440
        %v464 = vpack.c.b16 %v443, %v442
        %v465 = vpack.c.b16 %v445, %v444
        %v466 = vpack.c.b16 %v447, %v446
        %v467 = vpack.c.b16 %v449, %v448
        %v468 = vpack.c.b16 %v451, %v450
        %v469 = vpack.c.b16 %v453, %v452
        %486 = vmatprep.subr.bf16.mxu0 0
        %487 = vmatpush1.bf16.msra.mxu0 %v454
        %488 = vmatprep.subr.bf16.mxu0 0
        %489 = vmatpush1.bf16.msra.mxu0 %v455
        %490 = vmatprep.subr.bf16.mxu0 0
        %491 = vmatpush1.bf16.msra.mxu0 %v456
        %492 = vmatprep.subr.bf16.mxu0 0
        %493 = vmatpush1.bf16.msra.mxu0 %v457
        %494 = vmatprep.subr.bf16.mxu0 0
        %495 = vmatpush1.bf16.msra.mxu0 %v458
        %496 = vmatprep.subr.bf16.mxu0 0
        %497 = vmatpush1.bf16.msra.mxu0 %v459
        %498 = vmatprep.subr.bf16.mxu0 0
        %499 = vmatpush1.bf16.msra.mxu0 %v460
        %500 = vmatprep.subr.bf16.mxu0 0
        %501 = vmatpush1.bf16.msra.mxu0 %v461
        %502 = vmatprep.subr.bf16.mxu0 0
        %503 = vmatpush1.bf16.msra.mxu0 %v462
        %504 = vmatprep.subr.bf16.mxu0 0
        %505 = vmatpush1.bf16.msra.mxu0 %v463
        %506 = vmatprep.subr.bf16.mxu0 0
        %507 = vmatpush1.bf16.msra.mxu0 %v464
        %508 = vmatprep.subr.bf16.mxu0 0
        %509 = vmatpush1.bf16.msra.mxu0 %v465
        %510 = vmatprep.subr.bf16.mxu0 0
        %511 = vmatpush1.bf16.msra.mxu0 %v466
        %512 = vmatprep.subr.bf16.mxu0 0
        %513 = vmatpush1.bf16.msra.mxu0 %v467
        %514 = vmatprep.subr.bf16.mxu0 0
        %515 = vmatpush1.bf16.msra.mxu0 %v468
        %516 = vmatprep.subr.bf16.mxu0 0
        %517 = vmatpush1.bf16.msra.mxu0 %v469
        %518 = vmatprep.mubr.bf16.mxu0 %v383
        %519 = vmatmul.mubr.bf16.gmra.mrb[0].mxu0 %v382
        %v520 = vpop.f32.mrb[0].mxu0
        %v521 = vadd.f32 0.0, %v520
        %v522 = vpop.f32.mrb[0].mxu0
        %v523 = vpop.f32.mrb[0].mxu0
        %v524 = vadd.f32 0.0, %v523
        %v525 = vpop.f32.mrb[0].mxu0
        %526 = vmatprep.mubr.bf16.mxu0 %v385
        %527 = vmatmul.mubr.bf16.gmra.mrb[0].mxu0 %v384
        %v528 = vpop.f32.mrb[0].mxu0
        %v529 = vadd.f32 0.0, %v528
        %v530 = vpop.f32.mrb[0].mxu0
        %v531 = vpop.f32.mrb[0].mxu0
        %v532 = vadd.f32 0.0, %v531
        %v533 = vpop.f32.mrb[0].mxu0
        %534 = vdwg.mxu0
        %v535 = vadd.f32 %v521, %v524
        %v536 = vadd.f32 %v535, %v529
        %v537 = vadd.f32 %v536, %v532
        %v538 = vrot.slane %v537, 4
        %v539 = vadd.f32 %v537, %v538
        %v540 = vrot.slane %v539, 2
        %v541 = vadd.f32 %v539, %v540
        %v542 = vrot.slane %v541, 1
        %v543 = vadd.f32 %v541, %v542
        %v544 = vmul.f32 %v543, 0.03125
        %v545 = vmul.f32 %v521, %v521
        %v546 = vmul.f32 %v524, %v524
        %v547 = vmul.f32 %v529, %v529
        %v548 = vmul.f32 %v532, %v532
        %v549 = vadd.f32 %v545, %v546
        %v550 = vadd.f32 %v549, %v547
        %v551 = vadd.f32 %v550, %v548
        %v552 = vrot.slane %v551, 4
        %v553 = vadd.f32 %v551, %v552
        %v554 = vrot.slane %v553, 2
        %v555 = vadd.f32 %v553, %v554
        %v556 = vrot.slane %v555, 1
        %v557 = vadd.f32 %v555, %v556
        %v558 = vmul.f32 %v557, 0.03125
        %v559 = vmul.f32 %v544, %v544
        %v560 = vsub.f32 %v558, %v559
        %v561 = vmax.f32 %v560, 0.0
        %s562 = scalar_lea.vmem %s2, %s325
        %v563 = vld [vmem:[%s562] sm:$0x1]
        %s564 = scalar_lea.vmem %s3, %s325
        %v565 = vld [vmem:[%s564] sm:$0x1]
        %v566 = vadd.f32 %v561, 1e-05
        %v567 = vrsqrt.pop %v566
        %v568 = vmul.f32 %v563, %v567
        %v569 = vmul.f32 %v544, %v568
        %v570 = vsub.f32 %v565, %v569
        %v571 = vlaneseq
        %v572 = vshrl.u32 %v571, 7
        %v573 = vsub.s32 0, %v572
        %v574 = vrot.slane %v568, %v573
        %v575 = vmul.f32 %v521, %v574
        %v576 = vmul.f32 %v524, %v574
        %v577 = vmul.f32 %v529, %v574
        %v578 = vmul.f32 %v532, %v574
        %v579 = vlaneseq
        %v580 = vshrl.u32 %v579, 7
        %v581 = vsub.s32 0, %v580
        %v582 = vrot.slane %v570, %v581
        %v583 = vadd.f32 %v575, %v582
        %v584 = vadd.f32 %v576, %v582
        %v585 = vadd.f32 %v577, %v582
        %v586 = vadd.f32 %v578, %v582
        %v587 = vmax.f32 %v583, 0.0
        %v588 = vmax.f32 %v584, 0.0
        %v589 = vmax.f32 %v585, 0.0
        %v590 = vmax.f32 %v586, 0.0
        %v591 = vld [vmem:[%s317] sm:$0xff]
        %v592 = vld [vmem:[%s317 + $0x8] sm:$0xff]
        %v593 = vld [vmem:[%s317 + $0x10] sm:$0xff]
        %v594 = vld [vmem:[%s317 + $0x18] sm:$0xff]
        %v595 = vpack.c.bf16 %v588, %v587
        %v596 = vpack.c.bf16 %v590, %v589
        %v597 = vld [vmem:[%s286] sm:$0xf]
        %v598 = vld [vmem:[%s286 + $0x4] sm:$0xf]
        %v599 = vld [vmem:[%s286 + $0x8] sm:$0xf]
        %v600 = vld [vmem:[%s286 + $0xc] sm:$0xf]
        %v601 = vld [vmem:[%s286 + $0x10] sm:$0xf]
        %v602 = vld [vmem:[%s286 + $0x14] sm:$0xf]
        %v603 = vld [vmem:[%s286 + $0x18] sm:$0xf]
        %v604 = vld [vmem:[%s286 + $0x1c] sm:$0xf]
        %v605 = vld [vmem:[%s286 + $0x20] sm:$0xf]
        %v606 = vld [vmem:[%s286 + $0x24] sm:$0xf]
        %v607 = vld [vmem:[%s286 + $0x28] sm:$0xf]
        %v608 = vld [vmem:[%s286 + $0x2c] sm:$0xf]
        %v609 = vld [vmem:[%s286 + $0x30] sm:$0xf]
        %v610 = vld [vmem:[%s286 + $0x34] sm:$0xf]
        %v611 = vld [vmem:[%s286 + $0x38] sm:$0xf]
        %v612 = vld [vmem:[%s286 + $0x3c] sm:$0xf]
        %v629 = vunpack.c.l.b16 %v597
        %v630 = vunpack.c.l.b16 %v598
        %v631 = vunpack.c.l.b16 %v599
        %v632 = vunpack.c.l.b16 %v600
        %v633 = vunpack.c.l.b16 %v601
        %v634 = vunpack.c.l.b16 %v602
        %v635 = vunpack.c.l.b16 %v603
        %v636 = vunpack.c.l.b16 %v604
        %v637 = vunpack.c.l.b16 %v605
        %v638 = vunpack.c.l.b16 %v606
        %v639 = vunpack.c.l.b16 %v607
        %v640 = vunpack.c.l.b16 %v608
        %v641 = vunpack.c.l.b16 %v609
        %v642 = vunpack.c.l.b16 %v610
        %v643 = vunpack.c.l.b16 %v611
        %v644 = vunpack.c.l.b16 %v612
        %v645 = vpack.c.b16 %v630, %v629
        %v646 = vpack.c.b16 %v632, %v631
        %v647 = vpack.c.b16 %v634, %v633
        %v648 = vpack.c.b16 %v636, %v635
        %v649 = vpack.c.b16 %v638, %v637
        %v650 = vpack.c.b16 %v640, %v639
        %v651 = vpack.c.b16 %v642, %v641
        %v652 = vpack.c.b16 %v644, %v643
        %661 = vmatprep.subr.bf16.mxu0 0
        %662 = vmatpush1.bf16.msra.mxu0 %v645
        %663 = vmatprep.subr.bf16.mxu0 0
        %664 = vmatpush1.bf16.msra.mxu0 %v646
        %665 = vmatprep.subr.bf16.mxu0 0
        %666 = vmatpush1.bf16.msra.mxu0 %v647
        %667 = vmatprep.subr.bf16.mxu0 0
        %668 = vmatpush1.bf16.msra.mxu0 %v648
        %669 = vmatprep.subr.bf16.mxu0 0
        %670 = vmatpush1.bf16.msra.mxu0 %v649
        %671 = vmatprep.subr.bf16.mxu0 0
        %672 = vmatpush1.bf16.msra.mxu0 %v650
        %673 = vmatprep.subr.bf16.mxu0 0
        %674 = vmatpush1.bf16.msra.mxu0 %v651
        %675 = vmatprep.subr.bf16.mxu0 0
        %676 = vmatpush1.bf16.msra.mxu0 %v652
        %677 = vmatprep.subr.bf16.mxu0 0
        %678 = vmatpush1.bf16.msra.mxu0 0
        %679 = vmatprep.subr.bf16.mxu0 0
        %680 = vmatpush1.bf16.msra.mxu0 0
        %681 = vmatprep.subr.bf16.mxu0 0
        %682 = vmatpush1.bf16.msra.mxu0 0
        %683 = vmatprep.subr.bf16.mxu0 0
        %684 = vmatpush1.bf16.msra.mxu0 0
        %685 = vmatprep.subr.bf16.mxu0 0
        %686 = vmatpush1.bf16.msra.mxu0 0
        %687 = vmatprep.subr.bf16.mxu0 0
        %688 = vmatpush1.bf16.msra.mxu0 0
        %689 = vmatprep.subr.bf16.mxu0 0
        %690 = vmatpush1.bf16.msra.mxu0 0
        %691 = vmatprep.subr.bf16.mxu0 0
        %692 = vmatpush1.bf16.msra.mxu0 0
        %693 = vmatprep.mubr.bf16.mxu0 0
        %694 = vmatmul.mubr.bf16.gmra.mrb[0].mxu0 %v595
        %v695 = vpop.f32.mrb[0].mxu0
        %v696 = vadd.f32 0.0, %v695
        %v697 = vpop.f32.mrb[0].mxu0
        %v698 = vpop.f32.mrb[0].mxu0
        %v699 = vadd.f32 0.0, %v698
        %v700 = vpop.f32.mrb[0].mxu0
        %701 = vmatprep.mubr.bf16.mxu0 0
        %702 = vmatmul.mubr.bf16.gmra.mrb[0].mxu0 %v596
        %v703 = vpop.f32.mrb[0].mxu0
        %v704 = vadd.f32 0.0, %v703
        %v705 = vpop.f32.mrb[0].mxu0
        %v706 = vpop.f32.mrb[0].mxu0
        %v707 = vadd.f32 0.0, %v706
        %v708 = vpop.f32.mrb[0].mxu0
        %709 = vdwg.mxu0
        %v710 = vadd.f32 %v591, %v696
        %v711 = vadd.f32 %v592, %v699
        %v712 = vadd.f32 %v593, %v704
        %v713 = vadd.f32 %v594, %v707
        %714 = vst [vmem:[%s317] sm:$0xff] %v710
        %715 = vst [vmem:[%s317 + $0x8] sm:$0xff] %v711
        %716 = vst [vmem:[%s317 + $0x10] sm:$0xff] %v712
        %717 = vst [vmem:[%s317 + $0x18] sm:$0xff] %v713
        %s718 = sand.u32 %s166, 1
        %s719 = scalar_lea.sflag [#allocation4], %s718
        %s720 = sand.u32 %s166, 1
        %s721 = smul.addr %s720, 32
        %s722 = scalar_lea.vmem [#allocation8], %s721
        // Predicated region
        $region57: #{tpu_custom_call.1} parent=39 // pred_check
          %p723 = pneg %p176
        $region58: #{tpu_custom_call.1} parent=39 // pred_check_branch
          %725 = sbr.rel (%p723) target = $region60
        $region59: #{tpu_custom_call.1} parent=39 // pred_region
          %s727 = ssub.s32 512, 512
          %728 = vsyncadd %s719, %s727
          %s729 = smul.addr %s27, 4
          %s730 = smul.addr %s729, 128
          %s731 = scalar_lea.hbm %s5, %s730
          %s732 = sshll.u32 %s722, 4
          %s733 = int_to_ptr.vmem [resolvable:$true] %s732
          %738 = dma.vmem_to_hbm [thread:$0]  %s733, 512, %s731, %s719, 128, 128, 8
        $region60: #{tpu_custom_call.1} parent=39 // pred_fallthru
          _
      $region40: #{tpu_custom_call.1} parent=5 // pred_fallthru
        _
      %p739 = scmp.le.s32.totalorder 2, %s18
      // Predicated region
      $region61: #{tpu_custom_call.1} parent=5 // pred_check
        %p740 = pneg %p739
      $region62: #{tpu_custom_call.1} parent=5 // pred_check_branch
        %742 = sbr.rel (%p740) target = $region64
      $region63: #{tpu_custom_call.1} parent=5 // pred_region
        %s743 = ssub.s32 %s18, 2
        // Predicated region
        $region65: #{tpu_custom_call.1} parent=63 // pred_check
          %p744 = pneg %p182
        $region66: #{tpu_custom_call.1} parent=63 // pred_check_branch
          %746 = sbr.rel (%p744) target = $region68
        $region67: #{tpu_custom_call.1} parent=63 // pred_region
          %s747 = sand.u32 %s167, 1
          %s748 = scalar_lea.sflag [#allocation4], %s747
          %s749 = sand.u32 %s167, 1
          %s750 = smul.addr %s749, 32
          %s751 = scalar_lea.vmem [#allocation8], %s750
          %752 = dma.done %s748, 512
        $region68: #{tpu_custom_call.1} parent=63 // pred_fallthru
          _
      $region64: #{tpu_custom_call.1} parent=5 // pred_fallthru
        _
    $region6: #{tpu_custom_call.1} parent=1 // loop_footer
      %s22 = sadd.s32 1, %s18
    $region7: #{tpu_custom_call.1} parent=1 // loop_footer_branch
      %17 = sbr.rel target = $region3
    $region8: #{tpu_custom_call.1} parent=1 // loop_exit
      _
    %753 = vsyncpa [#allocation3], 1
    %s754 = scalar_lea.sflag [#allocation3], 1
    %755 = vsyncpa %s754, 1
    %756 = vsyncpa [#allocation6], 1
    %s757 = scalar_lea.sflag [#allocation6], 1
    %758 = vsyncpa %s757, 1
    %759 = vsyncpa [#allocation4], 1
    %s760 = scalar_lea.sflag [#allocation4], 1
    %761 = vsyncpa %s760, 1

</llo_original>
